<compile_context>
chip_gen: v5e
topology: v5e:2x2
jax: 0.10.0
libtpu: 0.0.40
codegen_flags: <defaults>
</compile_context>

<pallas_src>
import jax
import jax.numpy as jnp
from jax.experimental import pallas as pl
from jax.experimental.pallas import tpu as pltpu

IN_DIM = 784     # flattened MNIST features
H_REAL = 100     # true hidden / output width of the module
H_PAD = 128      # lane-padded width used inside the kernel
TB = 128         # batch tile (full MXU rows per matmul)


def _mlp_kernel(x_ref, w1_ref, b1_ref, w2_ref, b2_ref, w3_ref, b3_ref, o_ref):
    x = x_ref[...]  # (TB, 784) bf16

    def dense(a_bf16, w_ref, b_ref):
        # bf16 x bf16 matmul on the MXU, f32 accumulation, f32 bias add.
        return (
            jnp.dot(a_bf16, w_ref[...], preferred_element_type=jnp.float32)
            + b_ref[...]
        )

    # fc1 -> tanh (tanh in f32; pad columns stay exactly 0 since tanh(0)=0)
    h = jnp.tanh(dense(x, w1_ref, b1_ref))
    # fc2 -> tanh
    h = jnp.tanh(dense(h.astype(jnp.bfloat16), w2_ref, b2_ref))
    # fc3 -> tanh
    h = jnp.tanh(dense(h.astype(jnp.bfloat16), w3_ref, b3_ref))
    # fc3 applied a second time (no activation), exactly as in the PyTorch code
    logits = dense(h.astype(jnp.bfloat16), w3_ref, b3_ref)

    # Mask the 28 padded logit columns so they cannot affect the softmax.
    col = jax.lax.broadcasted_iota(jnp.int32, logits.shape, dimension=1)
    logits = jnp.where(col < H_REAL, logits, jnp.float32(-1e30))

    # Numerically stable log_softmax over dim=1 (f32).
    m = jnp.max(logits, axis=1, keepdims=True)
    shifted = logits - m
    lse = jnp.log(jnp.sum(jnp.exp(shifted), axis=1, keepdims=True))
    o_ref[...] = (shifted - lse).astype(o_ref.dtype)


def neural_network_forward(x, params, tb=TB):
    """x: (B, 784) float. params: dict from prepare_params(). Returns (B, 100) f32."""
    B = x.shape[0]
    n_blocks = pl.cdiv(B, tb)
    B_pad = n_blocks * tb

    xb = x.astype(jnp.bfloat16)
    if B_pad != B:
        xb = jnp.pad(xb, ((0, B_pad - B), (0, 0)))

    w1, b1 = params["w1_t"], params["b1"]
    w2, b2 = params["w2_t"], params["b2"]
    w3, b3 = params["w3_t"], params["b3"]

    # Advisory cost estimate (padded shapes).
    flops = 2 * B_pad * (IN_DIM * H_PAD + 3 * H_PAD * H_PAD)
    transcendentals = B_pad * (3 * H_PAD + H_PAD)  # 3x tanh + exp in softmax
    bytes_accessed = (
        B_pad * IN_DIM * 2                          # x (bf16)
        + (IN_DIM * H_PAD + 2 * H_PAD * H_PAD) * 2  # weights (bf16)
        + 3 * H_PAD * 4                             # biases (f32)
        + B_pad * H_PAD * 4                         # output (f32)
    )

    resident = lambda i: (0, 0)  # weights/biases: same block every grid step

    out = pl.pallas_call(
        _mlp_kernel,
        out_shape=jax.ShapeDtypeStruct((B_pad, H_PAD), jnp.float32),
        grid=(n_blocks,),
        in_specs=[
            pl.BlockSpec((tb, IN_DIM), lambda i: (i, 0)),     # x tile
            pl.BlockSpec((IN_DIM, H_PAD), resident),          # w1
            pl.BlockSpec((1, H_PAD), resident),               # b1
            pl.BlockSpec((H_PAD, H_PAD), resident),           # w2
            pl.BlockSpec((1, H_PAD), resident),               # b2
            pl.BlockSpec((H_PAD, H_PAD), resident),           # w3
            pl.BlockSpec((1, H_PAD), resident),               # b3
        ],
        out_specs=pl.BlockSpec((tb, H_PAD), lambda i: (i, 0)),
        compiler_params=pltpu.CompilerParams(
            dimension_semantics=("parallel",),
        ),
        cost_estimate=pl.CostEstimate(
            flops=flops,
            transcendentals=transcendentals,
            bytes_accessed=bytes_accessed,
        ),
    )(xb, w1, b1, w2, b2, w3, b3)

    return out[:B, :H_REAL]


def init_params(key):
    """Deterministic init mirroring the module's __init__ (PyTorch layout).

    nn.Linear stores weight as (out, in) and bias as (out,); U(-1/sqrt(in), +).
    """
    ks = jax.random.split(key, 8)

    def linear(kw, kb, fan_in, fan_out):
        bound = 1.0 / jnp.sqrt(fan_in)
        w = jax.random.uniform(kw, (fan_out, fan_in), jnp.float32, -bound, bound)
        b = jax.random.uniform(kb, (fan_out,), jnp.float32, -bound, bound)
        return w, b

    w1, b1 = linear(ks[0], ks[1], 784, 100)
    w2, b2 = linear(ks[2], ks[3], 100, 100)
    w3, b3 = linear(ks[4], ks[5], 100, 100)
    # fc4 (100 -> 10) exists in __init__ but is never used in forward().
    w4, b4 = linear(ks[6], ks[7], 100, 10)

    return {"w1": w1, "b1": b1, "w2": w2, "b2": b2,
            "w3": w3, "b3": b3, "w4": w4, "b4": b4}


def prepare_params(raw):
    """Transpose to (in, out), zero-pad widths to 128, cast weights to bf16."""
    def pad_wt(w, pad_in):
        wt = w.T  # (in, out)
        in_dim, out_dim = wt.shape
        in_pad = (H_PAD - in_dim) if pad_in else 0
        wt = jnp.pad(wt, ((0, in_pad), (0, H_PAD - out_dim)))
        return wt.astype(jnp.bfloat16)

    def pad_b(b):
        return jnp.pad(b, (0, H_PAD - b.shape[0])).reshape(1, H_PAD).astype(jnp.float32)

    return {
        "w1_t": pad_wt(raw["w1"], pad_in=False),  # (784, 128)
        "b1": pad_b(raw["b1"]),
        "w2_t": pad_wt(raw["w2"], pad_in=True),   # (128, 128)
        "b2": pad_b(raw["b2"]),
        "w3_t": pad_wt(raw["w3"], pad_in=True),   # (128, 128)
        "b3": pad_b(raw["b3"]),
    }


def _reference_forward(x, raw):
    """Pure-JAX f32 reference matching the PyTorch forward."""
    h = jnp.tanh(x @ raw["w1"].T + raw["b1"])
    h = jnp.tanh(h @ raw["w2"].T + raw["b2"])
    h = jnp.tanh(h @ raw["w3"].T + raw["b3"])
    logits = h @ raw["w3"].T + raw["b3"]
    return jax.nn.log_softmax(logits, axis=1)


if __name__ == "__main__":
    key = jax.random.PRNGKey(0)
    k_param, k_x = jax.random.split(key)

    raw = init_params(k_param)
    params = prepare_params(raw)

    # B=200: exercises both the 2-step batch grid and the pad/slice path.
    B = 200
    x = jax.random.normal(k_x, (B, IN_DIM), jnp.float32)

    out = neural_network_forward(x, params)
    out = jax.block_until_ready(out)

    assert out.shape == (B, H_REAL)
    # log_softmax rows exponentiate-sum to ~1
    row_sums = jnp.exp(out).sum(axis=1)
    assert bool(jnp.all(jnp.abs(row_sums - 1.0) < 1e-3)), "row sums off"
    # matches the f32 reference within bf16-matmul tolerance
    ref = _reference_forward(x, raw)
    assert bool(jnp.max(jnp.abs(out - ref)) < 0.1), "mismatch vs reference"

    print("KERNEL_OK")
</pallas_src>

<mosaic_0001>
module attributes {stable_mosaic.version = 11 : i64} {
  func.func @_mlp_kernel(%arg0: i32, %arg1: memref<128x784xbf16, #tpu.memory_space<vmem>>, %arg2: memref<784x128xbf16, #tpu.memory_space<vmem>>, %arg3: memref<1x128xf32, #tpu.memory_space<vmem>>, %arg4: memref<128x128xbf16, #tpu.memory_space<vmem>>, %arg5: memref<1x128xf32, #tpu.memory_space<vmem>>, %arg6: memref<128x128xbf16, #tpu.memory_space<vmem>>, %arg7: memref<1x128xf32, #tpu.memory_space<vmem>>, %arg8: memref<128x128xf32, #tpu.memory_space<vmem>>) attributes {dimension_semantics = [#tpu.dimension_semantics<parallel>], iteration_bounds = array<i64: 2>, scalar_prefetch = 0 : i64, scratch_operands = 0 : i64, tpu.core_type = #tpu.core_type<tc>, window_params = [{transform_indices = @transform_0, window_bounds = array<i64: 128, 784>}, {pipeline_mode = #tpu.pipeline_mode<synchronous>, transform_indices = @transform_1, window_bounds = array<i64: 784, 128>}, {pipeline_mode = #tpu.pipeline_mode<synchronous>, transform_indices = @transform_2, window_bounds = array<i64: 1, 128>}, {pipeline_mode = #tpu.pipeline_mode<synchronous>, transform_indices = @transform_3, window_bounds = array<i64: 128, 128>}, {pipeline_mode = #tpu.pipeline_mode<synchronous>, transform_indices = @transform_4, window_bounds = array<i64: 1, 128>}, {pipeline_mode = #tpu.pipeline_mode<synchronous>, transform_indices = @transform_5, window_bounds = array<i64: 128, 128>}, {pipeline_mode = #tpu.pipeline_mode<synchronous>, transform_indices = @transform_6, window_bounds = array<i64: 1, 128>}, {transform_indices = @transform_7, window_bounds = array<i64: 128, 128>}]} {
    %c0 = arith.constant 0 : index
    %c0_0 = arith.constant 0 : index
    %0 = vector.load %arg1[%c0, %c0_0] : memref<128x784xbf16, #tpu.memory_space<vmem>>, vector<128x784xbf16>
    %c0_1 = arith.constant 0 : index
    %c0_2 = arith.constant 0 : index
    %1 = vector.load %arg2[%c0_1, %c0_2] : memref<784x128xbf16, #tpu.memory_space<vmem>>, vector<784x128xbf16>
    %cst = arith.constant dense<0.000000e+00> : vector<128x128xf32>
    %2 = tpu.matmul %0, %1, %cst {dimension_numbers = #tpu.dot_dimension_numbers<[1], [0], [0], [1], [0, 0, 1, 1], [], []>} : vector<128x784xbf16>, vector<784x128xbf16>, vector<128x128xf32> -> vector<128x128xf32>
    %c0_3 = arith.constant 0 : index
    %c0_4 = arith.constant 0 : index
    %3 = vector.load %arg3[%c0_3, %c0_4] : memref<1x128xf32, #tpu.memory_space<vmem>>, vector<1x128xf32>
    %4 = vector.broadcast %3 : vector<1x128xf32> to vector<128x128xf32>
    %5 = arith.addf %2, %4 : vector<128x128xf32>
    %6 = math.tanh %5 : vector<128x128xf32>
    %7 = arith.truncf %6 : vector<128x128xf32> to vector<128x128xbf16>
    %c0_5 = arith.constant 0 : index
    %c0_6 = arith.constant 0 : index
    %8 = vector.load %arg4[%c0_5, %c0_6] : memref<128x128xbf16, #tpu.memory_space<vmem>>, vector<128x128xbf16>
    %cst_7 = arith.constant dense<0.000000e+00> : vector<128x128xf32>
    %9 = tpu.matmul %7, %8, %cst_7 {dimension_numbers = #tpu.dot_dimension_numbers<[1], [0], [0], [1], [0, 0, 1, 1], [], []>} : vector<128x128xbf16>, vector<128x128xbf16>, vector<128x128xf32> -> vector<128x128xf32>
    %c0_8 = arith.constant 0 : index
    %c0_9 = arith.constant 0 : index
    %10 = vector.load %arg5[%c0_8, %c0_9] : memref<1x128xf32, #tpu.memory_space<vmem>>, vector<1x128xf32>
    %11 = vector.broadcast %10 : vector<1x128xf32> to vector<128x128xf32>
    %12 = arith.addf %9, %11 : vector<128x128xf32>
    %13 = math.tanh %12 : vector<128x128xf32>
    %14 = arith.truncf %13 : vector<128x128xf32> to vector<128x128xbf16>
    %c0_10 = arith.constant 0 : index
    %c0_11 = arith.constant 0 : index
    %15 = vector.load %arg6[%c0_10, %c0_11] : memref<128x128xbf16, #tpu.memory_space<vmem>>, vector<128x128xbf16>
    %cst_12 = arith.constant dense<0.000000e+00> : vector<128x128xf32>
    %16 = tpu.matmul %14, %15, %cst_12 {dimension_numbers = #tpu.dot_dimension_numbers<[1], [0], [0], [1], [0, 0, 1, 1], [], []>} : vector<128x128xbf16>, vector<128x128xbf16>, vector<128x128xf32> -> vector<128x128xf32>
    %c0_13 = arith.constant 0 : index
    %c0_14 = arith.constant 0 : index
    %17 = vector.load %arg7[%c0_13, %c0_14] : memref<1x128xf32, #tpu.memory_space<vmem>>, vector<1x128xf32>
    %18 = vector.broadcast %17 : vector<1x128xf32> to vector<128x128xf32>
    %19 = arith.addf %16, %18 : vector<128x128xf32>
    %20 = math.tanh %19 : vector<128x128xf32>
    %21 = arith.truncf %20 : vector<128x128xf32> to vector<128x128xbf16>
    %c0_15 = arith.constant 0 : index
    %c0_16 = arith.constant 0 : index
    %22 = vector.load %arg6[%c0_15, %c0_16] : memref<128x128xbf16, #tpu.memory_space<vmem>>, vector<128x128xbf16>
    %cst_17 = arith.constant dense<0.000000e+00> : vector<128x128xf32>
    %23 = tpu.matmul %21, %22, %cst_17 {dimension_numbers = #tpu.dot_dimension_numbers<[1], [0], [0], [1], [0, 0, 1, 1], [], []>} : vector<128x128xbf16>, vector<128x128xbf16>, vector<128x128xf32> -> vector<128x128xf32>
    %c0_18 = arith.constant 0 : index
    %c0_19 = arith.constant 0 : index
    %24 = vector.load %arg7[%c0_18, %c0_19] : memref<1x128xf32, #tpu.memory_space<vmem>>, vector<1x128xf32>
    %25 = vector.broadcast %24 : vector<1x128xf32> to vector<128x128xf32>
    %26 = arith.addf %23, %25 : vector<128x128xf32>
    %27 = tpu.iota {dimensions = array<i32: 1>} : vector<128x128xi32>
    %c100_i32 = arith.constant 100 : i32
    %28 = vector.broadcast %c100_i32 : i32 to vector<128x128xi32>
    %29 = arith.cmpi slt, %27, %28 : vector<128x128xi32>
    %cst_20 = arith.constant -1.000000e+30 : f32
    %30 = vector.broadcast %cst_20 : f32 to vector<128x128xf32>
    %31 = arith.select %29, %26, %30 : vector<128x128xi1>, vector<128x128xf32>
    %cst_21 = arith.constant dense<0xFF800000> : vector<128xf32>
    %32 = vector.multi_reduction <maximumf>, %31, %cst_21 [1] : vector<128x128xf32> to vector<128xf32>
    %33 = vector.shape_cast %32 : vector<128xf32> to vector<128x1xf32>
    %34 = vector.broadcast %33 : vector<128x1xf32> to vector<128x128xf32>
    %35 = arith.subf %31, %34 : vector<128x128xf32>
    %36 = math.exp %35 : vector<128x128xf32>
    %cst_22 = arith.constant dense<0.000000e+00> : vector<128xf32>
    %37 = vector.multi_reduction <add>, %36, %cst_22 [1] : vector<128x128xf32> to vector<128xf32>
    %38 = vector.shape_cast %37 : vector<128xf32> to vector<128x1xf32>
    %39 = math.log %38 : vector<128x1xf32>
    %40 = vector.broadcast %39 : vector<128x1xf32> to vector<128x128xf32>
    %41 = arith.subf %35, %40 : vector<128x128xf32>
    %c0_23 = arith.constant 0 : index
    %c0_24 = arith.constant 0 : index
    %42 = vector.load %arg8[%c0_23, %c0_24] : memref<128x128xf32, #tpu.memory_space<vmem>>, vector<128x128xf32>
    tpu.vector_store %arg8[%c0_23, %c0_24], %41 {strides = array<i32>} : memref<128x128xf32, #tpu.memory_space<vmem>>, vector<128x128xf32>,
    return
  }
  func.func @transform_0(%arg0: i32) -> (i32, i32) {
    %c0_i32 = arith.constant 0 : i32
    %c0_i32_0 = arith.constant 0 : i32
    return %arg0, %c0_i32 : i32, i32
  }
  func.func @transform_1(%arg0: i32) -> (i32, i32) {
    %c0_i32 = arith.constant 0 : i32
    %c0_i32_0 = arith.constant 0 : i32
    %c0_i32_1 = arith.constant 0 : i32
    return %c0_i32, %c0_i32_0 : i32, i32
  }
  func.func @transform_2(%arg0: i32) -> (i32, i32) {
    %c0_i32 = arith.constant 0 : i32
    %c0_i32_0 = arith.constant 0 : i32
    %c0_i32_1 = arith.constant 0 : i32
    return %c0_i32, %c0_i32_0 : i32, i32
  }
  func.func @transform_3(%arg0: i32) -> (i32, i32) {
    %c0_i32 = arith.constant 0 : i32
    %c0_i32_0 = arith.constant 0 : i32
    %c0_i32_1 = arith.constant 0 : i32
    return %c0_i32, %c0_i32_0 : i32, i32
  }
  func.func @transform_4(%arg0: i32) -> (i32, i32) {
    %c0_i32 = arith.constant 0 : i32
    %c0_i32_0 = arith.constant 0 : i32
    %c0_i32_1 = arith.constant 0 : i32
    return %c0_i32, %c0_i32_0 : i32, i32
  }
  func.func @transform_5(%arg0: i32) -> (i32, i32) {
    %c0_i32 = arith.constant 0 : i32
    %c0_i32_0 = arith.constant 0 : i32
    %c0_i32_1 = arith.constant 0 : i32
    return %c0_i32, %c0_i32_0 : i32, i32
  }
  func.func @transform_6(%arg0: i32) -> (i32, i32) {
    %c0_i32 = arith.constant 0 : i32
    %c0_i32_0 = arith.constant 0 : i32
    %c0_i32_1 = arith.constant 0 : i32
    return %c0_i32, %c0_i32_0 : i32, i32
  }
  func.func @transform_7(%arg0: i32) -> (i32, i32) {
    %c0_i32 = arith.constant 0 : i32
    %c0_i32_0 = arith.constant 0 : i32
    return %arg0, %c0_i32 : i32, i32
  }
}

</mosaic_0001>

<llo_original>
// kernel: tpu_custom_call.1
$region0: #{tpu_custom_call.1}
  #allocation0 [shape = 'u32[]', space=smem, size = 0x4, offset = 0x4, fixed_abs, tag = 'smem constant byte address 0x4 - core index']
  #allocation1 [shape = 'u32[72,128]{1,0:T(1,128)}', space=vmem, size = 0x9000, scoped, tag = 'internal scratch']
  %s0 = inlined_call_operand.vmem [shape: bf16[256,784], index: 0, kind: input, shape index: {}]
  %s1 = inlined_call_operand.vmem [shape: bf16[784,128], index: 1, kind: input, shape index: {}]
  %s2 = inlined_call_operand.vmem [shape: f32[1,128], index: 2, kind: input, shape index: {}]
  %s3 = inlined_call_operand.vmem [shape: bf16[128,128], index: 3, kind: input, shape index: {}]
  %s4 = inlined_call_operand.vmem [shape: f32[1,128], index: 4, kind: input, shape index: {}]
  %s5 = inlined_call_operand.vmem [shape: bf16[128,128], index: 5, kind: input, shape index: {}]
  %s6 = inlined_call_operand.vmem [shape: f32[1,128], index: 6, kind: input, shape index: {}]
  %s7 = inlined_call_operand.hbm [shape: f32[256,128], index: 7, kind: output, shape index: {}]
  %s8 = sld [smem:[#allocation0]]
  $region61: #{tpu_custom_call.1} parent=0
    _
  %s10 = ssub.s32 1, %s8
  %s11 = scalar_select 0, %s10, %s8
  $region1: #{tpu_custom_call.1} parent=0
    #allocation2 [shape = 'u8[131072]{0}', space=vmem, size = 0x20000, scoped, tag = 'output window, operand 0']
    #allocation3 [shape = 's32[2]{0}', space=sflag, size = 0x8, scoped, tag = 'scoped memory for tpu_custom_call.1']
    %12 = vsyncpa [#allocation3], 0
    %s13 = scalar_lea.sflag [#allocation3], 1
    %14 = vsyncpa %s13, 0
    loop: start=0, step=1, limit=4
    $region2: #{tpu_custom_call.1} parent=1 // loop_pre_header
      _
    $region3: #{tpu_custom_call.1} parent=1 // loop_header
      %s16 = sphi 0, %s20
      %p17 = scmp.ge.s32.totalorder %s16, 4
      %s26 = sphi 0, %s28
      %s29 = sphi 0, %s26
      %s30 = sphi 0, %s29
      %s46 = sphi 0, %s30
      %s50 = sphi 0, %s50
      %s52 = sphi 0, %s50
      %s53 = sphi 0, %s52
      %s67 = sphi 0, %s53
      %s71 = sphi 0, %s71
      %s73 = sphi 0, %s71
      %s74 = sphi 0, %s73
      %s88 = sphi 0, %s74
      %s92 = sphi 0, %s92
      %s94 = sphi 0, %s92
      %s95 = sphi 0, %s94
      %s109 = sphi 0, %s95
      %s113 = sphi 0, %s113
      %s115 = sphi 0, %s113
      %s116 = sphi 0, %s115
      %s130 = sphi 0, %s116
      %s134 = sphi 0, %s134
      %s136 = sphi 0, %s134
      %s137 = sphi 0, %s136
      %s151 = sphi 0, %s137
      %s155 = sphi 0, %s155
      %s157 = sphi 0, %s155
      %s158 = sphi 0, %s157
      %s172 = sphi 0, %s158
      %s178 = sphi 0, %s180
      %s181 = sphi 0, %s178
      %s182 = sphi 0, %s181
      %s198 = sphi 0, %s182
    $region4: #{tpu_custom_call.1} parent=1 // loop_header_branch
      %19 = sbr.rel (%p17) target = $region8
    $region5: #{tpu_custom_call.1} parent=1 // loop_body
      %s21 = ssub.s32 %s16, 1
      %s22 = ssub.s32 %s16, 2
      %s23 = sadd.s32 %s16, 1
      %s24 = ssub.s32 %s16, %s23
      %p25 = scmp.eq.s32.totalorder %s24, 0
      %s27 = sadd.s32 %s26, 1
      %s28 = scalar_select %p25, %s26, %s27
      %p31 = pneg %p25
      %p32 = scmp.eq.s32.totalorder %s16, 1
      %p33 = por %p31, %p32
      %p34 = scmp.ne.s32.totalorder %s26, %s29
      %p35 = scmp.eq.s32.totalorder %s16, 0
      %p36 = por %p34, %p35
      %p37 = scmp.ne.s32.totalorder %s26, %s29
      %p38 = scmp.eq.s32.totalorder %s21, 1
      %p39 = por %p37, %p38
      %p40 = scmp.ne.s32.totalorder %s29, %s30
      %p41 = scmp.eq.s32.totalorder %s21, 0
      %p42 = por %p40, %p41
      %p43 = scmp.ne.s32.totalorder %s29, %s30
      %p44 = scmp.eq.s32.totalorder %s22, 1
      %p45 = por %p43, %p44
      %p47 = scmp.ne.s32.totalorder %s30, %s46
      %p48 = scmp.eq.s32.totalorder %s22, 0
      %p49 = por %p47, %p48
      %s51 = sadd.s32 %s50, 1
      %p54 = scmp.eq.s32.totalorder %s16, 1
      %p55 = scmp.ne.s32.totalorder %s50, %s52
      %p56 = scmp.eq.s32.totalorder %s16, 0
      %p57 = por %p55, %p56
      %p58 = scmp.ne.s32.totalorder %s50, %s52
      %p59 = scmp.eq.s32.totalorder %s21, 1
      %p60 = por %p58, %p59
      %p61 = scmp.ne.s32.totalorder %s52, %s53
      %p62 = scmp.eq.s32.totalorder %s21, 0
      %p63 = por %p61, %p62
      %p64 = scmp.ne.s32.totalorder %s52, %s53
      %p65 = scmp.eq.s32.totalorder %s22, 1
      %p66 = por %p64, %p65
      %p68 = scmp.ne.s32.totalorder %s53, %s67
      %p69 = scmp.eq.s32.totalorder %s22, 0
      %p70 = por %p68, %p69
      %s72 = sadd.s32 %s71, 1
      %p75 = scmp.eq.s32.totalorder %s16, 1
      %p76 = scmp.ne.s32.totalorder %s71, %s73
      %p77 = scmp.eq.s32.totalorder %s16, 0
      %p78 = por %p76, %p77
      %p79 = scmp.ne.s32.totalorder %s71, %s73
      %p80 = scmp.eq.s32.totalorder %s21, 1
      %p81 = por %p79, %p80
      %p82 = scmp.ne.s32.totalorder %s73, %s74
      %p83 = scmp.eq.s32.totalorder %s21, 0
      %p84 = por %p82, %p83
      %p85 = scmp.ne.s32.totalorder %s73, %s74
      %p86 = scmp.eq.s32.totalorder %s22, 1
      %p87 = por %p85, %p86
      %p89 = scmp.ne.s32.totalorder %s74, %s88
      %p90 = scmp.eq.s32.totalorder %s22, 0
      %p91 = por %p89, %p90
      %s93 = sadd.s32 %s92, 1
      %p96 = scmp.eq.s32.totalorder %s16, 1
      %p97 = scmp.ne.s32.totalorder %s92, %s94
      %p98 = scmp.eq.s32.totalorder %s16, 0
      %p99 = por %p97, %p98
      %p100 = scmp.ne.s32.totalorder %s92, %s94
      %p101 = scmp.eq.s32.totalorder %s21, 1
      %p102 = por %p100, %p101
      %p103 = scmp.ne.s32.totalorder %s94, %s95
      %p104 = scmp.eq.s32.totalorder %s21, 0
      %p105 = por %p103, %p104
      %p106 = scmp.ne.s32.totalorder %s94, %s95
      %p107 = scmp.eq.s32.totalorder %s22, 1
      %p108 = por %p106, %p107
      %p110 = scmp.ne.s32.totalorder %s95, %s109
      %p111 = scmp.eq.s32.totalorder %s22, 0
      %p112 = por %p110, %p111
      %s114 = sadd.s32 %s113, 1
      %p117 = scmp.eq.s32.totalorder %s16, 1
      %p118 = scmp.ne.s32.totalorder %s113, %s115
      %p119 = scmp.eq.s32.totalorder %s16, 0
      %p120 = por %p118, %p119
      %p121 = scmp.ne.s32.totalorder %s113, %s115
      %p122 = scmp.eq.s32.totalorder %s21, 1
      %p123 = por %p121, %p122
      %p124 = scmp.ne.s32.totalorder %s115, %s116
      %p125 = scmp.eq.s32.totalorder %s21, 0
      %p126 = por %p124, %p125
      %p127 = scmp.ne.s32.totalorder %s115, %s116
      %p128 = scmp.eq.s32.totalorder %s22, 1
      %p129 = por %p127, %p128
      %p131 = scmp.ne.s32.totalorder %s116, %s130
      %p132 = scmp.eq.s32.totalorder %s22, 0
      %p133 = por %p131, %p132
      %s135 = sadd.s32 %s134, 1
      %p138 = scmp.eq.s32.totalorder %s16, 1
      %p139 = scmp.ne.s32.totalorder %s134, %s136
      %p140 = scmp.eq.s32.totalorder %s16, 0
      %p141 = por %p139, %p140
      %p142 = scmp.ne.s32.totalorder %s134, %s136
      %p143 = scmp.eq.s32.totalorder %s21, 1
      %p144 = por %p142, %p143
      %p145 = scmp.ne.s32.totalorder %s136, %s137
      %p146 = scmp.eq.s32.totalorder %s21, 0
      %p147 = por %p145, %p146
      %p148 = scmp.ne.s32.totalorder %s136, %s137
      %p149 = scmp.eq.s32.totalorder %s22, 1
      %p150 = por %p148, %p149
      %p152 = scmp.ne.s32.totalorder %s137, %s151
      %p153 = scmp.eq.s32.totalorder %s22, 0
      %p154 = por %p152, %p153
      %s156 = sadd.s32 %s155, 1
      %p159 = scmp.eq.s32.totalorder %s16, 1
      %p160 = scmp.ne.s32.totalorder %s155, %s157
      %p161 = scmp.eq.s32.totalorder %s16, 0
      %p162 = por %p160, %p161
      %p163 = scmp.ne.s32.totalorder %s155, %s157
      %p164 = scmp.eq.s32.totalorder %s21, 1
      %p165 = por %p163, %p164
      %p166 = scmp.ne.s32.totalorder %s157, %s158
      %p167 = scmp.eq.s32.totalorder %s21, 0
      %p168 = por %p166, %p167
      %p169 = scmp.ne.s32.totalorder %s157, %s158
      %p170 = scmp.eq.s32.totalorder %s22, 1
      %p171 = por %p169, %p170
      %p173 = scmp.ne.s32.totalorder %s158, %s172
      %p174 = scmp.eq.s32.totalorder %s22, 0
      %p175 = por %p173, %p174
      %s176 = ssub.s32 %s16, %s23
      %p177 = scmp.eq.s32.totalorder %s176, 0
      %s179 = sadd.s32 %s178, 1
      %s180 = scalar_select %p177, %s178, %s179
      %p183 = pneg %p177
      %p184 = scmp.eq.s32.totalorder %s16, 1
      %p185 = por %p183, %p184
      %p186 = scmp.ne.s32.totalorder %s178, %s181
      %p187 = scmp.eq.s32.totalorder %s16, 0
      %p188 = por %p186, %p187
      %p189 = scmp.ne.s32.totalorder %s178, %s181
      %p190 = scmp.eq.s32.totalorder %s21, 1
      %p191 = por %p189, %p190
      %p192 = scmp.ne.s32.totalorder %s181, %s182
      %p193 = scmp.eq.s32.totalorder %s21, 0
      %p194 = por %p192, %p193
      %p195 = scmp.ne.s32.totalorder %s181, %s182
      %p196 = scmp.eq.s32.totalorder %s22, 1
      %p197 = por %p195, %p196
      %p199 = scmp.ne.s32.totalorder %s182, %s198
      %p200 = scmp.eq.s32.totalorder %s22, 0
      %p201 = por %p199, %p200
      %p202 = scmp.le.s32.totalorder 1, %s16
      %p203 = scmp.lt.s32.totalorder %s16, 3
      %p204 = pnand %p202, %p203
      %p205 = pneg %p204
      // Predicated region
      $region9: #{tpu_custom_call.1} parent=5 // pred_check
        _
      $region10: #{tpu_custom_call.1} parent=5 // pred_check_branch
        %207 = sbr.rel (%p204) target = $region12
      $region11: #{tpu_custom_call.1} parent=5 // pred_region
        %s208 = ssub.s32 %s16, 1
        // Predicated region
        $region13: #{tpu_custom_call.1} parent=11 // pred_check
          %p209 = pneg %p63
        $region14: #{tpu_custom_call.1} parent=11 // pred_check_branch
          %211 = sbr.rel (%p209) target = $region16
        $region15: #{tpu_custom_call.1} parent=11 // pred_region
          _
        $region16: #{tpu_custom_call.1} parent=11 // pred_fallthru
          _
        // Predicated region
        $region17: #{tpu_custom_call.1} parent=11 // pred_check
          %p212 = pneg %p84
        $region18: #{tpu_custom_call.1} parent=11 // pred_check_branch
          %214 = sbr.rel (%p212) target = $region20
        $region19: #{tpu_custom_call.1} parent=11 // pred_region
          _
        $region20: #{tpu_custom_call.1} parent=11 // pred_fallthru
          _
        // Predicated region
        $region21: #{tpu_custom_call.1} parent=11 // pred_check
          %p215 = pneg %p105
        $region22: #{tpu_custom_call.1} parent=11 // pred_check_branch
          %217 = sbr.rel (%p215) target = $region24
        $region23: #{tpu_custom_call.1} parent=11 // pred_region
          _
        $region24: #{tpu_custom_call.1} parent=11 // pred_fallthru
          _
        // Predicated region
        $region25: #{tpu_custom_call.1} parent=11 // pred_check
          %p218 = pneg %p126
        $region26: #{tpu_custom_call.1} parent=11 // pred_check_branch
          %220 = sbr.rel (%p218) target = $region28
        $region27: #{tpu_custom_call.1} parent=11 // pred_region
          _
        $region28: #{tpu_custom_call.1} parent=11 // pred_fallthru
          _
        // Predicated region
        $region29: #{tpu_custom_call.1} parent=11 // pred_check
          %p221 = pneg %p147
        $region30: #{tpu_custom_call.1} parent=11 // pred_check_branch
          %223 = sbr.rel (%p221) target = $region32
        $region31: #{tpu_custom_call.1} parent=11 // pred_region
          _
        $region32: #{tpu_custom_call.1} parent=11 // pred_fallthru
          _
        // Predicated region
        $region33: #{tpu_custom_call.1} parent=11 // pred_check
          %p224 = pneg %p168
        $region34: #{tpu_custom_call.1} parent=11 // pred_check_branch
          %226 = sbr.rel (%p224) target = $region36
        $region35: #{tpu_custom_call.1} parent=11 // pred_region
          _
        $region36: #{tpu_custom_call.1} parent=11 // pred_fallthru
          _
      $region12: #{tpu_custom_call.1} parent=5 // pred_fallthru
        _
      %p227 = scmp.lt.s32.totalorder %s16, 2
      // Predicated region
      $region37: #{tpu_custom_call.1} parent=5 // pred_check
        %p228 = pneg %p227
      $region38: #{tpu_custom_call.1} parent=5 // pred_check_branch
        %230 = sbr.rel (%p228) target = $region40
      $region39: #{tpu_custom_call.1} parent=5 // pred_region
        // Predicated region
        $region41: #{tpu_custom_call.1} parent=39 // pred_check
          %p231 = pneg %p36
        $region42: #{tpu_custom_call.1} parent=39 // pred_check_branch
          %233 = sbr.rel (%p231) target = $region44
        $region43: #{tpu_custom_call.1} parent=39 // pred_region
          %s234 = smul.u32 16, %s16
          %p235 = scmp.lt.s32.totalorder %s234, 31
          %s236 = scalar_select %p235, %s234, 31
          %s237 = smul.addr %s236, 7
          %s238 = smul.addr %s237, 4
          %s239 = scalar_lea.vmem %s0, %s238
          %s240 = smul.u32 16, %s16
        $region44: #{tpu_custom_call.1} parent=39 // pred_fallthru
          _
      $region40: #{tpu_custom_call.1} parent=5 // pred_fallthru
        _
      %p241 = scmp.le.s32.totalorder 1, %s16
      %p242 = scmp.lt.s32.totalorder %s16, 3
      %p243 = pnand %p241, %p242
      %p244 = pneg %p243
      // Predicated region
      $region45: #{tpu_custom_call.1} parent=5 // pred_check
        _
      $region46: #{tpu_custom_call.1} parent=5 // pred_check_branch
        %246 = sbr.rel (%p243) target = $region48
      $region47: #{tpu_custom_call.1} parent=5 // pred_region
        %s247 = ssub.s32 %s16, 1
        %s248 = smul.u32 16, %s21
        %p249 = scmp.lt.s32.totalorder %s248, 31
        %s250 = scalar_select %p249, %s248, 31
        %s251 = smul.addr %s250, 7
        %s252 = smul.addr %s251, 4
        %s253 = scalar_lea.vmem %s0, %s252
        %p254 = pneg %p42
        %p255 = pneg %p39
        %p256 = pneg %p63
        %p257 = pneg %p60
        %p258 = pneg %p84
        %p259 = pneg %p81
        %p260 = pneg %p105
        %p261 = pneg %p102
        %p262 = pneg %p126
        %p263 = pneg %p123
        %p264 = pneg %p147
        %p265 = pneg %p144
        %p266 = pneg %p168
        %p267 = pneg %p165
        %p268 = pneg %p194
        %p269 = pneg %p191
        %s270 = sand.u32 %s181, 1
        %s271 = scalar_lea.sflag [#allocation3], %s270
        %s272 = sand.u32 %s181, 1
        %s273 = smul.addr %s272, 128
        %s274 = scalar_lea.vmem [#allocation2], %s273
        %s275 = smul.u32 16, %s21
        %p276 = scmp.lt.s32.totalorder %s275, 31
        %s277 = scalar_select %p276, %s275, 31
        %s278 = smul.addr %s277, 7
        %s279 = smul.addr %s278, 4
        %s280 = scalar_lea.vmem %s0, %s279
        %s281 = smul.u32 16, %s21
        %s282 = smul.u32 16, %s21
        %v284 = vld [vmem:[%s280] sm:$0xff]
        %v285 = vld [vmem:[%s280 + $0x8] sm:$0xff]
        %v286 = vld [vmem:[%s280 + $0x10] sm:$0xff]
        %v287 = vld [vmem:[%s280 + $0x18] sm:$0xf]
        %v288 = vld [vmem:[%s280 + $0x1c] sm:$0xff]
        %v289 = vld [vmem:[%s280 + $0x24] sm:$0xff]
        %v290 = vld [vmem:[%s280 + $0x2c] sm:$0xff]
        %v291 = vld [vmem:[%s280 + $0x34] sm:$0xf]
        %v292 = vld [vmem:[%s280 + $0x38] sm:$0xff]
        %v293 = vld [vmem:[%s280 + $0x40] sm:$0xff]
        %v294 = vld [vmem:[%s280 + $0x48] sm:$0xff]
        %v295 = vld [vmem:[%s280 + $0x50] sm:$0xf]
        %v296 = vld [vmem:[%s280 + $0x54] sm:$0xff]
        %v297 = vld [vmem:[%s280 + $0x5c] sm:$0xff]
        %v298 = vld [vmem:[%s280 + $0x64] sm:$0xff]
        %v299 = vld [vmem:[%s280 + $0x6c] sm:$0xf]
        %v300 = vld [vmem:[%s280 + $0x70] sm:$0xff]
        %v301 = vld [vmem:[%s280 + $0x78] sm:$0xff]
        %v302 = vld [vmem:[%s280 + $0x80] sm:$0xff]
        %v303 = vld [vmem:[%s280 + $0x88] sm:$0xf]
        %v304 = vld [vmem:[%s280 + $0x8c] sm:$0xff]
        %v305 = vld [vmem:[%s280 + $0x94] sm:$0xff]
        %v306 = vld [vmem:[%s280 + $0x9c] sm:$0xff]
        %v307 = vld [vmem:[%s280 + $0xa4] sm:$0xf]
        %v308 = vld [vmem:[%s280 + $0xa8] sm:$0xff]
        %v309 = vld [vmem:[%s280 + $0xb0] sm:$0xff]
        %v310 = vld [vmem:[%s280 + $0xb8] sm:$0xff]
        %v311 = vld [vmem:[%s280 + $0xc0] sm:$0xf]
        %v312 = vld [vmem:[%s280 + $0xc4] sm:$0xff]
        %v313 = vld [vmem:[%s280 + $0xcc] sm:$0xff]
        %v314 = vld [vmem:[%s280 + $0xd4] sm:$0xff]
        %v315 = vld [vmem:[%s280 + $0xdc] sm:$0xf]
        %v316 = vld [vmem:[%s280 + $0xe0] sm:$0xff]
        %v317 = vld [vmem:[%s280 + $0xe8] sm:$0xff]
        %v318 = vld [vmem:[%s280 + $0xf0] sm:$0xff]
        %v319 = vld [vmem:[%s280 + $0xf8] sm:$0xf]
        %v320 = vld [vmem:[%s280 + $0xfc] sm:$0xff]
        %v321 = vld [vmem:[%s280 + $0x104] sm:$0xff]
        %v322 = vld [vmem:[%s280 + $0x10c] sm:$0xff]
        %v323 = vld [vmem:[%s280 + $0x114] sm:$0xf]
        %v324 = vld [vmem:[%s280 + $0x118] sm:$0xff]
        %v325 = vld [vmem:[%s280 + $0x120] sm:$0xff]
        %v326 = vld [vmem:[%s280 + $0x128] sm:$0xff]
        %v327 = vld [vmem:[%s280 + $0x130] sm:$0xf]
        %v328 = vld [vmem:[%s280 + $0x134] sm:$0xff]
        %v329 = vld [vmem:[%s280 + $0x13c] sm:$0xff]
        %v330 = vld [vmem:[%s280 + $0x144] sm:$0xff]
        %v331 = vld [vmem:[%s280 + $0x14c] sm:$0xf]
        %v332 = vld [vmem:[%s280 + $0x150] sm:$0xff]
        %v333 = vld [vmem:[%s280 + $0x158] sm:$0xff]
        %v334 = vld [vmem:[%s280 + $0x160] sm:$0xff]
        %v335 = vld [vmem:[%s280 + $0x168] sm:$0xf]
        %v336 = vld [vmem:[%s280 + $0x16c] sm:$0xff]
        %v337 = vld [vmem:[%s280 + $0x174] sm:$0xff]
        %v338 = vld [vmem:[%s280 + $0x17c] sm:$0xff]
        %v339 = vld [vmem:[%s280 + $0x184] sm:$0xf]
        %v340 = vld [vmem:[%s280 + $0x188] sm:$0xff]
        %v341 = vld [vmem:[%s280 + $0x190] sm:$0xff]
        %v342 = vld [vmem:[%s280 + $0x198] sm:$0xff]
        %v343 = vld [vmem:[%s280 + $0x1a0] sm:$0xf]
        %v344 = vld [vmem:[%s280 + $0x1a4] sm:$0xff]
        %v345 = vld [vmem:[%s280 + $0x1ac] sm:$0xff]
        %v346 = vld [vmem:[%s280 + $0x1b4] sm:$0xff]
        %v347 = vld [vmem:[%s280 + $0x1bc] sm:$0xf]
        %v348 = vld [vmem:[%s1] sm:$0xf]
        %v349 = vld [vmem:[%s1 + $0x4] sm:$0xf]
        %v350 = vld [vmem:[%s1 + $0x8] sm:$0xf]
        %v351 = vld [vmem:[%s1 + $0xc] sm:$0xf]
        %v352 = vld [vmem:[%s1 + $0x10] sm:$0xf]
        %v353 = vld [vmem:[%s1 + $0x14] sm:$0xf]
        %v354 = vld [vmem:[%s1 + $0x18] sm:$0xf]
        %v355 = vld [vmem:[%s1 + $0x1c] sm:$0xf]
        %v356 = vld [vmem:[%s1 + $0x20] sm:$0xf]
        %v357 = vld [vmem:[%s1 + $0x24] sm:$0xf]
        %v358 = vld [vmem:[%s1 + $0x28] sm:$0xf]
        %v359 = vld [vmem:[%s1 + $0x2c] sm:$0xf]
        %v360 = vld [vmem:[%s1 + $0x30] sm:$0xf]
        %v361 = vld [vmem:[%s1 + $0x34] sm:$0xf]
        %v362 = vld [vmem:[%s1 + $0x38] sm:$0xf]
        %v363 = vld [vmem:[%s1 + $0x3c] sm:$0xf]
        %v364 = vld [vmem:[%s1 + $0x40] sm:$0xf]
        %v365 = vld [vmem:[%s1 + $0x44] sm:$0xf]
        %v366 = vld [vmem:[%s1 + $0x48] sm:$0xf]
        %v367 = vld [vmem:[%s1 + $0x4c] sm:$0xf]
        %v368 = vld [vmem:[%s1 + $0x50] sm:$0xf]
        %v369 = vld [vmem:[%s1 + $0x54] sm:$0xf]
        %v370 = vld [vmem:[%s1 + $0x58] sm:$0xf]
        %v371 = vld [vmem:[%s1 + $0x5c] sm:$0xf]
        %v372 = vld [vmem:[%s1 + $0x60] sm:$0xf]
        %v373 = vld [vmem:[%s1 + $0x64] sm:$0xf]
        %v374 = vld [vmem:[%s1 + $0x68] sm:$0xf]
        %v375 = vld [vmem:[%s1 + $0x6c] sm:$0xf]
        %v376 = vld [vmem:[%s1 + $0x70] sm:$0xf]
        %v377 = vld [vmem:[%s1 + $0x74] sm:$0xf]
        %v378 = vld [vmem:[%s1 + $0x78] sm:$0xf]
        %v379 = vld [vmem:[%s1 + $0x7c] sm:$0xf]
        %v380 = vld [vmem:[%s1 + $0x80] sm:$0xf]
        %v381 = vld [vmem:[%s1 + $0x84] sm:$0xf]
        %v382 = vld [vmem:[%s1 + $0x88] sm:$0xf]
        %v383 = vld [vmem:[%s1 + $0x8c] sm:$0xf]
        %v384 = vld [vmem:[%s1 + $0x90] sm:$0xf]
        %v385 = vld [vmem:[%s1 + $0x94] sm:$0xf]
        %v386 = vld [vmem:[%s1 + $0x98] sm:$0xf]
        %v387 = vld [vmem:[%s1 + $0x9c] sm:$0xf]
        %v388 = vld [vmem:[%s1 + $0xa0] sm:$0xf]
        %v389 = vld [vmem:[%s1 + $0xa4] sm:$0xf]
        %v390 = vld [vmem:[%s1 + $0xa8] sm:$0xf]
        %v391 = vld [vmem:[%s1 + $0xac] sm:$0xf]
        %v392 = vld [vmem:[%s1 + $0xb0] sm:$0xf]
        %v393 = vld [vmem:[%s1 + $0xb4] sm:$0xf]
        %v394 = vld [vmem:[%s1 + $0xb8] sm:$0xf]
        %v395 = vld [vmem:[%s1 + $0xbc] sm:$0xf]
        %v396 = vld [vmem:[%s1 + $0xc0] sm:$0xf]
        %v397 = vld [vmem:[%s1 + $0xc4] sm:$0xf]
        %v398 = vld [vmem:[%s1 + $0xc8] sm:$0xf]
        %v399 = vld [vmem:[%s1 + $0xcc] sm:$0xf]
        %v400 = vld [vmem:[%s1 + $0xd0] sm:$0xf]
        %v401 = vld [vmem:[%s1 + $0xd4] sm:$0xf]
        %v402 = vld [vmem:[%s1 + $0xd8] sm:$0xf]
        %v403 = vld [vmem:[%s1 + $0xdc] sm:$0xf]
        %v404 = vld [vmem:[%s1 + $0xe0] sm:$0xf]
        %v405 = vld [vmem:[%s1 + $0xe4] sm:$0xf]
        %v406 = vld [vmem:[%s1 + $0xe8] sm:$0xf]
        %v407 = vld [vmem:[%s1 + $0xec] sm:$0xf]
        %v408 = vld [vmem:[%s1 + $0xf0] sm:$0xf]
        %v409 = vld [vmem:[%s1 + $0xf4] sm:$0xf]
        %v410 = vld [vmem:[%s1 + $0xf8] sm:$0xf]
        %v411 = vld [vmem:[%s1 + $0xfc] sm:$0xf]
        %v412 = vld [vmem:[%s1 + $0x100] sm:$0xf]
        %v413 = vld [vmem:[%s1 + $0x104] sm:$0xf]
        %v414 = vld [vmem:[%s1 + $0x108] sm:$0xf]
        %v415 = vld [vmem:[%s1 + $0x10c] sm:$0xf]
        %v416 = vld [vmem:[%s1 + $0x110] sm:$0xf]
        %v417 = vld [vmem:[%s1 + $0x114] sm:$0xf]
        %v418 = vld [vmem:[%s1 + $0x118] sm:$0xf]
        %v419 = vld [vmem:[%s1 + $0x11c] sm:$0xf]
        %v420 = vld [vmem:[%s1 + $0x120] sm:$0xf]
        %v421 = vld [vmem:[%s1 + $0x124] sm:$0xf]
        %v422 = vld [vmem:[%s1 + $0x128] sm:$0xf]
        %v423 = vld [vmem:[%s1 + $0x12c] sm:$0xf]
        %v424 = vld [vmem:[%s1 + $0x130] sm:$0xf]
        %v425 = vld [vmem:[%s1 + $0x134] sm:$0xf]
        %v426 = vld [vmem:[%s1 + $0x138] sm:$0xf]
        %v427 = vld [vmem:[%s1 + $0x13c] sm:$0xf]
        %v428 = vld [vmem:[%s1 + $0x140] sm:$0xf]
        %v429 = vld [vmem:[%s1 + $0x144] sm:$0xf]
        %v430 = vld [vmem:[%s1 + $0x148] sm:$0xf]
        %v431 = vld [vmem:[%s1 + $0x14c] sm:$0xf]
        %v432 = vld [vmem:[%s1 + $0x150] sm:$0xf]
        %v433 = vld [vmem:[%s1 + $0x154] sm:$0xf]
        %v434 = vld [vmem:[%s1 + $0x158] sm:$0xf]
        %v435 = vld [vmem:[%s1 + $0x15c] sm:$0xf]
        %v436 = vld [vmem:[%s1 + $0x160] sm:$0xf]
        %v437 = vld [vmem:[%s1 + $0x164] sm:$0xf]
        %v438 = vld [vmem:[%s1 + $0x168] sm:$0xf]
        %v439 = vld [vmem:[%s1 + $0x16c] sm:$0xf]
        %v440 = vld [vmem:[%s1 + $0x170] sm:$0xf]
        %v441 = vld [vmem:[%s1 + $0x174] sm:$0xf]
        %v442 = vld [vmem:[%s1 + $0x178] sm:$0xf]
        %v443 = vld [vmem:[%s1 + $0x17c] sm:$0xf]
        %v444 = vld [vmem:[%s1 + $0x180] sm:$0xf]
        %v445 = vld [vmem:[%s1 + $0x184] sm:$0xf]
        %v446 = vld [vmem:[%s2] sm:$0x1]
        %v448 = vperm.slane %v446, 0
        %v514 = vunpack.c.l.b16 %v284
        %v515 = vunpack.c.h.b16 %v284
        %v516 = vunpack.c.l.b16 %v285
        %v517 = vunpack.c.h.b16 %v285
        %v518 = vunpack.c.l.b16 %v286
        %v519 = vunpack.c.h.b16 %v286
        %v520 = vunpack.c.l.b16 %v287
        %v521 = vunpack.c.l.b16 %v288
        %v522 = vunpack.c.h.b16 %v288
        %v523 = vunpack.c.l.b16 %v289
        %v524 = vunpack.c.h.b16 %v289
        %v525 = vunpack.c.l.b16 %v290
        %v526 = vunpack.c.h.b16 %v290
        %v527 = vunpack.c.l.b16 %v291
        %v528 = vunpack.c.l.b16 %v292
        %v529 = vunpack.c.h.b16 %v292
        %v530 = vunpack.c.l.b16 %v293
        %v531 = vunpack.c.h.b16 %v293
        %v532 = vunpack.c.l.b16 %v294
        %v533 = vunpack.c.h.b16 %v294
        %v534 = vunpack.c.l.b16 %v295
        %v535 = vunpack.c.l.b16 %v296
        %v536 = vunpack.c.h.b16 %v296
        %v537 = vunpack.c.l.b16 %v297
        %v538 = vunpack.c.h.b16 %v297
        %v539 = vunpack.c.l.b16 %v298
        %v540 = vunpack.c.h.b16 %v298
        %v541 = vunpack.c.l.b16 %v299
        %v542 = vunpack.c.l.b16 %v300
        %v543 = vunpack.c.h.b16 %v300
        %v544 = vunpack.c.l.b16 %v301
        %v545 = vunpack.c.h.b16 %v301
        %v546 = vunpack.c.l.b16 %v302
        %v547 = vunpack.c.h.b16 %v302
        %v548 = vunpack.c.l.b16 %v303
        %v549 = vunpack.c.l.b16 %v304
        %v550 = vunpack.c.h.b16 %v304
        %v551 = vunpack.c.l.b16 %v305
        %v552 = vunpack.c.h.b16 %v305
        %v553 = vunpack.c.l.b16 %v306
        %v554 = vunpack.c.h.b16 %v306
        %v555 = vunpack.c.l.b16 %v307
        %v556 = vunpack.c.l.b16 %v308
        %v557 = vunpack.c.h.b16 %v308
        %v558 = vunpack.c.l.b16 %v309
        %v559 = vunpack.c.h.b16 %v309
        %v560 = vunpack.c.l.b16 %v310
        %v561 = vunpack.c.h.b16 %v310
        %v562 = vunpack.c.l.b16 %v311
        %v563 = vunpack.c.l.b16 %v312
        %v564 = vunpack.c.h.b16 %v312
        %v565 = vunpack.c.l.b16 %v313
        %v566 = vunpack.c.h.b16 %v313
        %v567 = vunpack.c.l.b16 %v314
        %v568 = vunpack.c.h.b16 %v314
        %v569 = vunpack.c.l.b16 %v315
        %v570 = vunpack.c.l.b16 %v316
        %v571 = vunpack.c.h.b16 %v316
        %v572 = vunpack.c.l.b16 %v317
        %v573 = vunpack.c.h.b16 %v317
        %v574 = vunpack.c.l.b16 %v318
        %v575 = vunpack.c.h.b16 %v318
        %v576 = vunpack.c.l.b16 %v319
        %v577 = vunpack.c.l.b16 %v320
        %v578 = vunpack.c.h.b16 %v320
        %v579 = vunpack.c.l.b16 %v321
        %v580 = vunpack.c.h.b16 %v321
        %v581 = vunpack.c.l.b16 %v322
        %v582 = vunpack.c.h.b16 %v322
        %v583 = vunpack.c.l.b16 %v323
        %v584 = vunpack.c.l.b16 %v324
        %v585 = vunpack.c.h.b16 %v324
        %v586 = vunpack.c.l.b16 %v325
        %v587 = vunpack.c.h.b16 %v325
        %v588 = vunpack.c.l.b16 %v326
        %v589 = vunpack.c.h.b16 %v326
        %v590 = vunpack.c.l.b16 %v327
        %v591 = vunpack.c.l.b16 %v328
        %v592 = vunpack.c.h.b16 %v328
        %v593 = vunpack.c.l.b16 %v329
        %v594 = vunpack.c.h.b16 %v329
        %v595 = vunpack.c.l.b16 %v330
        %v596 = vunpack.c.h.b16 %v330
        %v597 = vunpack.c.l.b16 %v331
        %v598 = vunpack.c.l.b16 %v332
        %v599 = vunpack.c.h.b16 %v332
        %v600 = vunpack.c.l.b16 %v333
        %v601 = vunpack.c.h.b16 %v333
        %v602 = vunpack.c.l.b16 %v334
        %v603 = vunpack.c.h.b16 %v334
        %v604 = vunpack.c.l.b16 %v335
        %v605 = vunpack.c.l.b16 %v336
        %v606 = vunpack.c.h.b16 %v336
        %v607 = vunpack.c.l.b16 %v337
        %v608 = vunpack.c.h.b16 %v337
        %v609 = vunpack.c.l.b16 %v338
        %v610 = vunpack.c.h.b16 %v338
        %v611 = vunpack.c.l.b16 %v339
        %v612 = vunpack.c.l.b16 %v340
        %v613 = vunpack.c.h.b16 %v340
        %v614 = vunpack.c.l.b16 %v341
        %v615 = vunpack.c.h.b16 %v341
        %v616 = vunpack.c.l.b16 %v342
        %v617 = vunpack.c.h.b16 %v342
        %v618 = vunpack.c.l.b16 %v343
        %v619 = vunpack.c.l.b16 %v344
        %v620 = vunpack.c.h.b16 %v344
        %v621 = vunpack.c.l.b16 %v345
        %v622 = vunpack.c.h.b16 %v345
        %v623 = vunpack.c.l.b16 %v346
        %v624 = vunpack.c.h.b16 %v346
        %v625 = vunpack.c.l.b16 %v347
        %v626 = vpack.c.b16 %v521, %v514
        %v627 = vpack.c.b16 %v522, %v515
        %v628 = vpack.c.b16 %v523, %v516
        %v629 = vpack.c.b16 %v524, %v517
        %v630 = vpack.c.b16 %v525, %v518
        %v631 = vpack.c.b16 %v526, %v519
        %v632 = vpack.c.b16 %v527, %v520
        %v633 = vpack.c.b16 %v535, %v528
        %v634 = vpack.c.b16 %v536, %v529
        %v635 = vpack.c.b16 %v537, %v530
        %v636 = vpack.c.b16 %v538, %v531
        %v637 = vpack.c.b16 %v539, %v532
        %v638 = vpack.c.b16 %v540, %v533
        %v639 = vpack.c.b16 %v541, %v534
        %v640 = vpack.c.b16 %v549, %v542
        %v641 = vpack.c.b16 %v550, %v543
        %v642 = vpack.c.b16 %v551, %v544
        %v643 = vpack.c.b16 %v552, %v545
        %v644 = vpack.c.b16 %v553, %v546
        %v645 = vpack.c.b16 %v554, %v547
        %v646 = vpack.c.b16 %v555, %v548
        %v647 = vpack.c.b16 %v563, %v556
        %v648 = vpack.c.b16 %v564, %v557
        %v649 = vpack.c.b16 %v565, %v558
        %v650 = vpack.c.b16 %v566, %v559
        %v651 = vpack.c.b16 %v567, %v560
        %v652 = vpack.c.b16 %v568, %v561
        %v653 = vpack.c.b16 %v569, %v562
        %v654 = vpack.c.b16 %v577, %v570
        %v655 = vpack.c.b16 %v578, %v571
        %v656 = vpack.c.b16 %v579, %v572
        %v657 = vpack.c.b16 %v580, %v573
        %v658 = vpack.c.b16 %v581, %v574
        %v659 = vpack.c.b16 %v582, %v575
        %v660 = vpack.c.b16 %v583, %v576
        %v661 = vpack.c.b16 %v591, %v584
        %v662 = vpack.c.b16 %v592, %v585
        %v663 = vpack.c.b16 %v593, %v586
        %v664 = vpack.c.b16 %v594, %v587
        %v665 = vpack.c.b16 %v595, %v588
        %v666 = vpack.c.b16 %v596, %v589
        %v667 = vpack.c.b16 %v597, %v590
        %v668 = vpack.c.b16 %v605, %v598
        %v669 = vpack.c.b16 %v606, %v599
        %v670 = vpack.c.b16 %v607, %v600
        %v671 = vpack.c.b16 %v608, %v601
        %v672 = vpack.c.b16 %v609, %v602
        %v673 = vpack.c.b16 %v610, %v603
        %v674 = vpack.c.b16 %v611, %v604
        %v675 = vpack.c.b16 %v619, %v612
        %v676 = vpack.c.b16 %v620, %v613
        %v677 = vpack.c.b16 %v621, %v614
        %v678 = vpack.c.b16 %v622, %v615
        %v679 = vpack.c.b16 %v623, %v616
        %v680 = vpack.c.b16 %v624, %v617
        %v681 = vpack.c.b16 %v625, %v618
        %v828 = vunpack.c.l.b16 %v348
        %v829 = vunpack.c.l.b16 %v349
        %v830 = vunpack.c.l.b16 %v350
        %v831 = vunpack.c.l.b16 %v351
        %v832 = vunpack.c.l.b16 %v352
        %v833 = vunpack.c.l.b16 %v353
        %v834 = vunpack.c.l.b16 %v354
        %v835 = vunpack.c.l.b16 %v355
        %v836 = vunpack.c.l.b16 %v356
        %v837 = vunpack.c.l.b16 %v357
        %v838 = vunpack.c.l.b16 %v358
        %v839 = vunpack.c.l.b16 %v359
        %v840 = vunpack.c.l.b16 %v360
        %v841 = vunpack.c.l.b16 %v361
        %v842 = vunpack.c.l.b16 %v362
        %v843 = vunpack.c.l.b16 %v363
        %v844 = vunpack.c.l.b16 %v364
        %v845 = vunpack.c.l.b16 %v365
        %v846 = vunpack.c.l.b16 %v366
        %v847 = vunpack.c.l.b16 %v367
        %v848 = vunpack.c.l.b16 %v368
        %v849 = vunpack.c.l.b16 %v369
        %v850 = vunpack.c.l.b16 %v370
        %v851 = vunpack.c.l.b16 %v371
        %v852 = vunpack.c.l.b16 %v372
        %v853 = vunpack.c.l.b16 %v373
        %v854 = vunpack.c.l.b16 %v374
        %v855 = vunpack.c.l.b16 %v375
        %v856 = vunpack.c.l.b16 %v376
        %v857 = vunpack.c.l.b16 %v377
        %v858 = vunpack.c.l.b16 %v378
        %v859 = vunpack.c.l.b16 %v379
        %v860 = vunpack.c.l.b16 %v380
        %v861 = vunpack.c.l.b16 %v381
        %v862 = vunpack.c.l.b16 %v382
        %v863 = vunpack.c.l.b16 %v383
        %v864 = vunpack.c.l.b16 %v384
        %v865 = vunpack.c.l.b16 %v385
        %v866 = vunpack.c.l.b16 %v386
        %v867 = vunpack.c.l.b16 %v387
        %v868 = vunpack.c.l.b16 %v388
        %v869 = vunpack.c.l.b16 %v389
        %v870 = vunpack.c.l.b16 %v390
        %v871 = vunpack.c.l.b16 %v391
        %v872 = vunpack.c.l.b16 %v392
        %v873 = vunpack.c.l.b16 %v393
        %v874 = vunpack.c.l.b16 %v394
        %v875 = vunpack.c.l.b16 %v395
        %v876 = vunpack.c.l.b16 %v396
        %v877 = vunpack.c.l.b16 %v397
        %v878 = vunpack.c.l.b16 %v398
        %v879 = vunpack.c.l.b16 %v399
        %v880 = vunpack.c.l.b16 %v400
        %v881 = vunpack.c.l.b16 %v401
        %v882 = vunpack.c.l.b16 %v402
        %v883 = vunpack.c.l.b16 %v403
        %v884 = vunpack.c.l.b16 %v404
        %v885 = vunpack.c.l.b16 %v405
        %v886 = vunpack.c.l.b16 %v406
        %v887 = vunpack.c.l.b16 %v407
        %v888 = vunpack.c.l.b16 %v408
        %v889 = vunpack.c.l.b16 %v409
        %v890 = vunpack.c.l.b16 %v410
        %v891 = vunpack.c.l.b16 %v411
        %v892 = vunpack.c.l.b16 %v412
        %v893 = vunpack.c.l.b16 %v413
        %v894 = vunpack.c.l.b16 %v414
        %v895 = vunpack.c.l.b16 %v415
        %v896 = vunpack.c.l.b16 %v416
        %v897 = vunpack.c.l.b16 %v417
        %v898 = vunpack.c.l.b16 %v418
        %v899 = vunpack.c.l.b16 %v419
        %v900 = vunpack.c.l.b16 %v420
        %v901 = vunpack.c.l.b16 %v421
        %v902 = vunpack.c.l.b16 %v422
        %v903 = vunpack.c.l.b16 %v423
        %v904 = vunpack.c.l.b16 %v424
        %v905 = vunpack.c.l.b16 %v425
        %v906 = vunpack.c.l.b16 %v426
        %v907 = vunpack.c.l.b16 %v427
        %v908 = vunpack.c.l.b16 %v428
        %v909 = vunpack.c.l.b16 %v429
        %v910 = vunpack.c.l.b16 %v430
        %v911 = vunpack.c.l.b16 %v431
        %v912 = vunpack.c.l.b16 %v432
        %v913 = vunpack.c.l.b16 %v433
        %v914 = vunpack.c.l.b16 %v434
        %v915 = vunpack.c.l.b16 %v435
        %v916 = vunpack.c.l.b16 %v436
        %v917 = vunpack.c.l.b16 %v437
        %v918 = vunpack.c.l.b16 %v438
        %v919 = vunpack.c.l.b16 %v439
        %v920 = vunpack.c.l.b16 %v440
        %v921 = vunpack.c.l.b16 %v441
        %v922 = vunpack.c.l.b16 %v442
        %v923 = vunpack.c.l.b16 %v443
        %v924 = vunpack.c.l.b16 %v444
        %v925 = vunpack.c.l.b16 %v445
        %v926 = vpack.c.b16 %v829, %v828
        %v927 = vpack.c.b16 %v831, %v830
        %v928 = vpack.c.b16 %v833, %v832
        %v929 = vpack.c.b16 %v835, %v834
        %v930 = vpack.c.b16 %v837, %v836
        %v931 = vpack.c.b16 %v839, %v838
        %v932 = vpack.c.b16 %v841, %v840
        %v933 = vpack.c.b16 %v843, %v842
        %v934 = vpack.c.b16 %v845, %v844
        %v935 = vpack.c.b16 %v847, %v846
        %v936 = vpack.c.b16 %v849, %v848
        %v937 = vpack.c.b16 %v851, %v850
        %v938 = vpack.c.b16 %v853, %v852
        %v939 = vpack.c.b16 %v855, %v854
        %v940 = vpack.c.b16 %v857, %v856
        %v941 = vpack.c.b16 %v859, %v858
        %v942 = vpack.c.b16 %v861, %v860
        %v943 = vpack.c.b16 %v863, %v862
        %v944 = vpack.c.b16 %v865, %v864
        %v945 = vpack.c.b16 %v867, %v866
        %v946 = vpack.c.b16 %v869, %v868
        %v947 = vpack.c.b16 %v871, %v870
        %v948 = vpack.c.b16 %v873, %v872
        %v949 = vpack.c.b16 %v875, %v874
        %v950 = vpack.c.b16 %v877, %v876
        %v951 = vpack.c.b16 %v879, %v878
        %v952 = vpack.c.b16 %v881, %v880
        %v953 = vpack.c.b16 %v883, %v882
        %v954 = vpack.c.b16 %v885, %v884
        %v955 = vpack.c.b16 %v887, %v886
        %v956 = vpack.c.b16 %v889, %v888
        %v957 = vpack.c.b16 %v891, %v890
        %v958 = vpack.c.b16 %v893, %v892
        %v959 = vpack.c.b16 %v895, %v894
        %v960 = vpack.c.b16 %v897, %v896
        %v961 = vpack.c.b16 %v899, %v898
        %v962 = vpack.c.b16 %v901, %v900
        %v963 = vpack.c.b16 %v903, %v902
        %v964 = vpack.c.b16 %v905, %v904
        %v965 = vpack.c.b16 %v907, %v906
        %v966 = vpack.c.b16 %v909, %v908
        %v967 = vpack.c.b16 %v911, %v910
        %v968 = vpack.c.b16 %v913, %v912
        %v969 = vpack.c.b16 %v915, %v914
        %v970 = vpack.c.b16 %v917, %v916
        %v971 = vpack.c.b16 %v919, %v918
        %v972 = vpack.c.b16 %v921, %v920
        %v973 = vpack.c.b16 %v923, %v922
        %v974 = vpack.c.b16 %v925, %v924
        %vm1024 = vcmask 130048
        %v1026 = vsel %vm1024, %v632, 0
        %v1029 = vsel %vm1024, %v639, 0
        %v1032 = vsel %vm1024, %v646, 0
        %v1035 = vsel %vm1024, %v653, 0
        %v1038 = vsel %vm1024, %v660, 0
        %v1041 = vsel %vm1024, %v667, 0
        %v1044 = vsel %vm1024, %v674, 0
        %v1047 = vsel %vm1024, %v681, 0
        %1049 = vmatpush.bf16.msra.mxu0 %v933
        %1050 = vmatpush.bf16.msra.mxu0 %v932
        %1051 = vmatpush.bf16.msra.mxu0 %v931
        %1052 = vmatpush.bf16.msra.mxu0 %v930
        %1053 = vmatpush.bf16.msra.mxu0 %v929
        %1054 = vmatpush.bf16.msra.mxu0 %v928
        %1055 = vmatpush.bf16.msra.mxu0 %v927
        %1056 = vmatpush.bf16.msra.mxu0 %v926
        %1057 = vmatmul.bf16.gmra.mxu0 %v626
        %v1058 = vpop.f32.mrf.mxu0
        %v1059 = vadd.f32 %v448, %v1058
        %v1060 = vpop.f32.mrf.mxu0
        %v1061 = vadd.f32 %v448, %v1060
        %1062 = vmatmul.bf16.gmra.mxu0 %v633
        %v1063 = vpop.f32.mrf.mxu0
        %v1064 = vadd.f32 %v448, %v1063
        %v1065 = vpop.f32.mrf.mxu0
        %v1066 = vadd.f32 %v448, %v1065
        %1067 = vmatmul.bf16.gmra.mxu0 %v640
        %v1068 = vpop.f32.mrf.mxu0
        %v1069 = vadd.f32 %v448, %v1068
        %v1070 = vpop.f32.mrf.mxu0
        %v1071 = vadd.f32 %v448, %v1070
        %1072 = vmatmul.bf16.gmra.mxu0 %v647
        %v1073 = vpop.f32.mrf.mxu0
        %v1074 = vadd.f32 %v448, %v1073
        %v1075 = vpop.f32.mrf.mxu0
        %v1076 = vadd.f32 %v448, %v1075
        %1077 = vmatmul.bf16.gmra.mxu0 %v654
        %v1078 = vpop.f32.mrf.mxu0
        %v1079 = vadd.f32 %v448, %v1078
        %v1080 = vpop.f32.mrf.mxu0
        %v1081 = vadd.f32 %v448, %v1080
        %1082 = vmatmul.bf16.gmra.mxu0 %v661
        %v1083 = vpop.f32.mrf.mxu0
        %v1084 = vadd.f32 %v448, %v1083
        %v1085 = vpop.f32.mrf.mxu0
        %v1086 = vadd.f32 %v448, %v1085
        %1087 = vmatmul.bf16.gmra.mxu0 %v668
        %v1088 = vpop.f32.mrf.mxu0
        %v1089 = vadd.f32 %v448, %v1088
        %v1090 = vpop.f32.mrf.mxu0
        %v1091 = vadd.f32 %v448, %v1090
        %1092 = vmatmul.bf16.gmra.mxu0 %v675
        %v1093 = vpop.f32.mrf.mxu0
        %v1094 = vadd.f32 %v448, %v1093
        %v1095 = vpop.f32.mrf.mxu0
        %v1096 = vadd.f32 %v448, %v1095
        %1097 = vdwg.mxu0
        %1098 = vmatpush.bf16.msra.mxu0 %v941
        %1099 = vmatpush.bf16.msra.mxu0 %v940
        %1100 = vmatpush.bf16.msra.mxu0 %v939
        %1101 = vmatpush.bf16.msra.mxu0 %v938
        %1102 = vmatpush.bf16.msra.mxu0 %v937
        %1103 = vmatpush.bf16.msra.mxu0 %v936
        %1104 = vmatpush.bf16.msra.mxu0 %v935
        %1105 = vmatpush.bf16.msra.mxu0 %v934
        %1106 = vmatmul.bf16.gmra.mxu0 %v627
        %v1107 = vpop.f32.mrf.mxu0
        %v1108 = vadd.f32 %v1059, %v1107
        %v1109 = vpop.f32.mrf.mxu0
        %v1110 = vadd.f32 %v1061, %v1109
        %1111 = vmatmul.bf16.gmra.mxu0 %v634
        %v1112 = vpop.f32.mrf.mxu0
        %v1113 = vadd.f32 %v1064, %v1112
        %v1114 = vpop.f32.mrf.mxu0
        %v1115 = vadd.f32 %v1066, %v1114
        %1116 = vmatmul.bf16.gmra.mxu0 %v641
        %v1117 = vpop.f32.mrf.mxu0
        %v1118 = vadd.f32 %v1069, %v1117
        %v1119 = vpop.f32.mrf.mxu0
        %v1120 = vadd.f32 %v1071, %v1119
        %1121 = vmatmul.bf16.gmra.mxu0 %v648
        %v1122 = vpop.f32.mrf.mxu0
        %v1123 = vadd.f32 %v1074, %v1122
        %v1124 = vpop.f32.mrf.mxu0
        %v1125 = vadd.f32 %v1076, %v1124
        %1126 = vmatmul.bf16.gmra.mxu0 %v655
        %v1127 = vpop.f32.mrf.mxu0
        %v1128 = vadd.f32 %v1079, %v1127
        %v1129 = vpop.f32.mrf.mxu0
        %v1130 = vadd.f32 %v1081, %v1129
        %1131 = vmatmul.bf16.gmra.mxu0 %v662
        %v1132 = vpop.f32.mrf.mxu0
        %v1133 = vadd.f32 %v1084, %v1132
        %v1134 = vpop.f32.mrf.mxu0
        %v1135 = vadd.f32 %v1086, %v1134
        %1136 = vmatmul.bf16.gmra.mxu0 %v669
        %v1137 = vpop.f32.mrf.mxu0
        %v1138 = vadd.f32 %v1089, %v1137
        %v1139 = vpop.f32.mrf.mxu0
        %v1140 = vadd.f32 %v1091, %v1139
        %1141 = vmatmul.bf16.gmra.mxu0 %v676
        %v1142 = vpop.f32.mrf.mxu0
        %v1143 = vadd.f32 %v1094, %v1142
        %v1144 = vpop.f32.mrf.mxu0
        %v1145 = vadd.f32 %v1096, %v1144
        %1146 = vdwg.mxu0
        %1147 = vmatpush.bf16.msra.mxu0 %v949
        %1148 = vmatpush.bf16.msra.mxu0 %v948
        %1149 = vmatpush.bf16.msra.mxu0 %v947
        %1150 = vmatpush.bf16.msra.mxu0 %v946
        %1151 = vmatpush.bf16.msra.mxu0 %v945
        %1152 = vmatpush.bf16.msra.mxu0 %v944
        %1153 = vmatpush.bf16.msra.mxu0 %v943
        %1154 = vmatpush.bf16.msra.mxu0 %v942
        %1155 = vmatmul.bf16.gmra.mxu0 %v628
        %v1156 = vpop.f32.mrf.mxu0
        %v1157 = vadd.f32 %v1108, %v1156
        %v1158 = vpop.f32.mrf.mxu0
        %v1159 = vadd.f32 %v1110, %v1158
        %1160 = vmatmul.bf16.gmra.mxu0 %v635
        %v1161 = vpop.f32.mrf.mxu0
        %v1162 = vadd.f32 %v1113, %v1161
        %v1163 = vpop.f32.mrf.mxu0
        %v1164 = vadd.f32 %v1115, %v1163
        %1165 = vmatmul.bf16.gmra.mxu0 %v642
        %v1166 = vpop.f32.mrf.mxu0
        %v1167 = vadd.f32 %v1118, %v1166
        %v1168 = vpop.f32.mrf.mxu0
        %v1169 = vadd.f32 %v1120, %v1168
        %1170 = vmatmul.bf16.gmra.mxu0 %v649
        %v1171 = vpop.f32.mrf.mxu0
        %v1172 = vadd.f32 %v1123, %v1171
        %v1173 = vpop.f32.mrf.mxu0
        %v1174 = vadd.f32 %v1125, %v1173
        %1175 = vmatmul.bf16.gmra.mxu0 %v656
        %v1176 = vpop.f32.mrf.mxu0
        %v1177 = vadd.f32 %v1128, %v1176
        %v1178 = vpop.f32.mrf.mxu0
        %v1179 = vadd.f32 %v1130, %v1178
        %1180 = vmatmul.bf16.gmra.mxu0 %v663
        %v1181 = vpop.f32.mrf.mxu0
        %v1182 = vadd.f32 %v1133, %v1181
        %v1183 = vpop.f32.mrf.mxu0
        %v1184 = vadd.f32 %v1135, %v1183
        %1185 = vmatmul.bf16.gmra.mxu0 %v670
        %v1186 = vpop.f32.mrf.mxu0
        %v1187 = vadd.f32 %v1138, %v1186
        %v1188 = vpop.f32.mrf.mxu0
        %v1189 = vadd.f32 %v1140, %v1188
        %1190 = vmatmul.bf16.gmra.mxu0 %v677
        %v1191 = vpop.f32.mrf.mxu0
        %v1192 = vadd.f32 %v1143, %v1191
        %v1193 = vpop.f32.mrf.mxu0
        %v1194 = vadd.f32 %v1145, %v1193
        %1195 = vdwg.mxu0
        %1196 = vmatpush.bf16.msra.mxu0 %v957
        %1197 = vmatpush.bf16.msra.mxu0 %v956
        %1198 = vmatpush.bf16.msra.mxu0 %v955
        %1199 = vmatpush.bf16.msra.mxu0 %v954
        %1200 = vmatpush.bf16.msra.mxu0 %v953
        %1201 = vmatpush.bf16.msra.mxu0 %v952
        %1202 = vmatpush.bf16.msra.mxu0 %v951
        %1203 = vmatpush.bf16.msra.mxu0 %v950
        %1204 = vmatmul.bf16.gmra.mxu0 %v629
        %v1205 = vpop.f32.mrf.mxu0
        %v1206 = vadd.f32 %v1157, %v1205
        %v1207 = vpop.f32.mrf.mxu0
        %v1208 = vadd.f32 %v1159, %v1207
        %1209 = vmatmul.bf16.gmra.mxu0 %v636
        %v1210 = vpop.f32.mrf.mxu0
        %v1211 = vadd.f32 %v1162, %v1210
        %v1212 = vpop.f32.mrf.mxu0
        %v1213 = vadd.f32 %v1164, %v1212
        %1214 = vmatmul.bf16.gmra.mxu0 %v643
        %v1215 = vpop.f32.mrf.mxu0
        %v1216 = vadd.f32 %v1167, %v1215
        %v1217 = vpop.f32.mrf.mxu0
        %v1218 = vadd.f32 %v1169, %v1217
        %1219 = vmatmul.bf16.gmra.mxu0 %v650
        %v1220 = vpop.f32.mrf.mxu0
        %v1221 = vadd.f32 %v1172, %v1220
        %v1222 = vpop.f32.mrf.mxu0
        %v1223 = vadd.f32 %v1174, %v1222
        %1224 = vmatmul.bf16.gmra.mxu0 %v657
        %v1225 = vpop.f32.mrf.mxu0
        %v1226 = vadd.f32 %v1177, %v1225
        %v1227 = vpop.f32.mrf.mxu0
        %v1228 = vadd.f32 %v1179, %v1227
        %1229 = vmatmul.bf16.gmra.mxu0 %v664
        %v1230 = vpop.f32.mrf.mxu0
        %v1231 = vadd.f32 %v1182, %v1230
        %v1232 = vpop.f32.mrf.mxu0
        %v1233 = vadd.f32 %v1184, %v1232
        %1234 = vmatmul.bf16.gmra.mxu0 %v671
        %v1235 = vpop.f32.mrf.mxu0
        %v1236 = vadd.f32 %v1187, %v1235
        %v1237 = vpop.f32.mrf.mxu0
        %v1238 = vadd.f32 %v1189, %v1237
        %1239 = vmatmul.bf16.gmra.mxu0 %v678
        %v1240 = vpop.f32.mrf.mxu0
        %v1241 = vadd.f32 %v1192, %v1240
        %v1242 = vpop.f32.mrf.mxu0
        %v1243 = vadd.f32 %v1194, %v1242
        %1244 = vdwg.mxu0
        %1245 = vmatpush.bf16.msra.mxu0 %v965
        %1246 = vmatpush.bf16.msra.mxu0 %v964
        %1247 = vmatpush.bf16.msra.mxu0 %v963
        %1248 = vmatpush.bf16.msra.mxu0 %v962
        %1249 = vmatpush.bf16.msra.mxu0 %v961
        %1250 = vmatpush.bf16.msra.mxu0 %v960
        %1251 = vmatpush.bf16.msra.mxu0 %v959
        %1252 = vmatpush.bf16.msra.mxu0 %v958
        %1253 = vmatmul.bf16.gmra.mxu0 %v630
        %v1254 = vpop.f32.mrf.mxu0
        %v1255 = vadd.f32 %v1206, %v1254
        %v1256 = vpop.f32.mrf.mxu0
        %v1257 = vadd.f32 %v1208, %v1256
        %1258 = vmatmul.bf16.gmra.mxu0 %v637
        %v1259 = vpop.f32.mrf.mxu0
        %v1260 = vadd.f32 %v1211, %v1259
        %v1261 = vpop.f32.mrf.mxu0
        %v1262 = vadd.f32 %v1213, %v1261
        %1263 = vmatmul.bf16.gmra.mxu0 %v644
        %v1264 = vpop.f32.mrf.mxu0
        %v1265 = vadd.f32 %v1216, %v1264
        %v1266 = vpop.f32.mrf.mxu0
        %v1267 = vadd.f32 %v1218, %v1266
        %1268 = vmatmul.bf16.gmra.mxu0 %v651
        %v1269 = vpop.f32.mrf.mxu0
        %v1270 = vadd.f32 %v1221, %v1269
        %v1271 = vpop.f32.mrf.mxu0
        %v1272 = vadd.f32 %v1223, %v1271
        %1273 = vmatmul.bf16.gmra.mxu0 %v658
        %v1274 = vpop.f32.mrf.mxu0
        %v1275 = vadd.f32 %v1226, %v1274
        %v1276 = vpop.f32.mrf.mxu0
        %v1277 = vadd.f32 %v1228, %v1276
        %1278 = vmatmul.bf16.gmra.mxu0 %v665
        %v1279 = vpop.f32.mrf.mxu0
        %v1280 = vadd.f32 %v1231, %v1279
        %v1281 = vpop.f32.mrf.mxu0
        %v1282 = vadd.f32 %v1233, %v1281
        %1283 = vmatmul.bf16.gmra.mxu0 %v672
        %v1284 = vpop.f32.mrf.mxu0
        %v1285 = vadd.f32 %v1236, %v1284
        %v1286 = vpop.f32.mrf.mxu0
        %v1287 = vadd.f32 %v1238, %v1286
        %1288 = vmatmul.bf16.gmra.mxu0 %v679
        %v1289 = vpop.f32.mrf.mxu0
        %v1290 = vadd.f32 %v1241, %v1289
        %v1291 = vpop.f32.mrf.mxu0
        %v1292 = vadd.f32 %v1243, %v1291
        %1293 = vdwg.mxu0
        %1294 = vmatpush.bf16.msra.mxu0 %v973
        %1295 = vmatpush.bf16.msra.mxu0 %v972
        %1296 = vmatpush.bf16.msra.mxu0 %v971
        %1297 = vmatpush.bf16.msra.mxu0 %v970
        %1298 = vmatpush.bf16.msra.mxu0 %v969
        %1299 = vmatpush.bf16.msra.mxu0 %v968
        %1300 = vmatpush.bf16.msra.mxu0 %v967
        %1301 = vmatpush.bf16.msra.mxu0 %v966
        %1302 = vmatmul.bf16.gmra.mxu0 %v631
        %v1303 = vpop.f32.mrf.mxu0
        %v1304 = vadd.f32 %v1255, %v1303
        %v1305 = vpop.f32.mrf.mxu0
        %v1306 = vadd.f32 %v1257, %v1305
        %1307 = vmatmul.bf16.gmra.mxu0 %v638
        %v1308 = vpop.f32.mrf.mxu0
        %v1309 = vadd.f32 %v1260, %v1308
        %v1310 = vpop.f32.mrf.mxu0
        %v1311 = vadd.f32 %v1262, %v1310
        %1312 = vmatmul.bf16.gmra.mxu0 %v645
        %v1313 = vpop.f32.mrf.mxu0
        %v1314 = vadd.f32 %v1265, %v1313
        %v1315 = vpop.f32.mrf.mxu0
        %v1316 = vadd.f32 %v1267, %v1315
        %1317 = vmatmul.bf16.gmra.mxu0 %v652
        %v1318 = vpop.f32.mrf.mxu0
        %v1319 = vadd.f32 %v1270, %v1318
        %v1320 = vpop.f32.mrf.mxu0
        %v1321 = vadd.f32 %v1272, %v1320
        %1322 = vmatmul.bf16.gmra.mxu0 %v659
        %v1323 = vpop.f32.mrf.mxu0
        %v1324 = vadd.f32 %v1275, %v1323
        %v1325 = vpop.f32.mrf.mxu0
        %v1326 = vadd.f32 %v1277, %v1325
        %1327 = vmatmul.bf16.gmra.mxu0 %v666
        %v1328 = vpop.f32.mrf.mxu0
        %v1329 = vadd.f32 %v1280, %v1328
        %v1330 = vpop.f32.mrf.mxu0
        %v1331 = vadd.f32 %v1282, %v1330
        %1332 = vmatmul.bf16.gmra.mxu0 %v673
        %v1333 = vpop.f32.mrf.mxu0
        %v1334 = vadd.f32 %v1285, %v1333
        %v1335 = vpop.f32.mrf.mxu0
        %v1336 = vadd.f32 %v1287, %v1335
        %1337 = vmatmul.bf16.gmra.mxu0 %v680
        %v1338 = vpop.f32.mrf.mxu0
        %v1339 = vadd.f32 %v1290, %v1338
        %v1340 = vpop.f32.mrf.mxu0
        %v1341 = vadd.f32 %v1292, %v1340
        %1342 = vdwg.mxu0
        %1343 = vmatpush.bf16.msra.mxu0 0
        %1344 = vmatpush.bf16.msra.mxu0 0
        %1345 = vmatpush.bf16.msra.mxu0 0
        %1346 = vmatpush.bf16.msra.mxu0 0
        %1347 = vmatpush.bf16.msra.mxu0 0
        %1348 = vmatpush.bf16.msra.mxu0 0
        %1349 = vmatpush.bf16.msra.mxu0 0
        %1350 = vmatpush.bf16.msra.mxu0 %v974
        %1351 = vmatmul.bf16.gmra.mxu0 %v1026
        %v1352 = vpop.f32.mrf.mxu0
        %v1353 = vadd.f32 %v1304, %v1352
        %v1354 = vpop.f32.mrf.mxu0
        %v1355 = vadd.f32 %v1306, %v1354
        %1356 = vmatmul.bf16.gmra.mxu0 %v1029
        %v1357 = vpop.f32.mrf.mxu0
        %v1358 = vadd.f32 %v1309, %v1357
        %v1359 = vpop.f32.mrf.mxu0
        %v1360 = vadd.f32 %v1311, %v1359
        %1361 = vmatmul.bf16.gmra.mxu0 %v1032
        %v1362 = vpop.f32.mrf.mxu0
        %v1363 = vadd.f32 %v1314, %v1362
        %v1364 = vpop.f32.mrf.mxu0
        %v1365 = vadd.f32 %v1316, %v1364
        %1366 = vmatmul.bf16.gmra.mxu0 %v1035
        %v1367 = vpop.f32.mrf.mxu0
        %v1368 = vadd.f32 %v1319, %v1367
        %v1369 = vpop.f32.mrf.mxu0
        %v1370 = vadd.f32 %v1321, %v1369
        %1371 = vmatmul.bf16.gmra.mxu0 %v1038
        %v1372 = vpop.f32.mrf.mxu0
        %v1373 = vadd.f32 %v1324, %v1372
        %v1374 = vpop.f32.mrf.mxu0
        %v1375 = vadd.f32 %v1326, %v1374
        %1376 = vmatmul.bf16.gmra.mxu0 %v1041
        %v1377 = vpop.f32.mrf.mxu0
        %v1378 = vadd.f32 %v1329, %v1377
        %v1379 = vpop.f32.mrf.mxu0
        %v1380 = vadd.f32 %v1331, %v1379
        %1381 = vmatmul.bf16.gmra.mxu0 %v1044
        %v1382 = vpop.f32.mrf.mxu0
        %v1383 = vadd.f32 %v1334, %v1382
        %v1384 = vpop.f32.mrf.mxu0
        %v1385 = vadd.f32 %v1336, %v1384
        %1386 = vmatmul.bf16.gmra.mxu0 %v1047
        %v1387 = vpop.f32.mrf.mxu0
        %v1388 = vadd.f32 %v1339, %v1387
        %v1389 = vpop.f32.mrf.mxu0
        %v1390 = vadd.f32 %v1341, %v1389
        %1391 = vdwg.mxu0
        %v1392 = vtanh.pop %v1353
        %v1393 = vtanh.pop %v1355
        %v1394 = vtanh.pop %v1358
        %v1395 = vtanh.pop %v1360
        %v1396 = vtanh.pop %v1363
        %v1397 = vtanh.pop %v1365
        %v1398 = vtanh.pop %v1368
        %v1399 = vtanh.pop %v1370
        %v1400 = vtanh.pop %v1373
        %v1401 = vtanh.pop %v1375
        %v1402 = vtanh.pop %v1378
        %v1403 = vtanh.pop %v1380
        %v1404 = vtanh.pop %v1383
        %v1405 = vtanh.pop %v1385
        %v1406 = vtanh.pop %v1388
        %v1407 = vtanh.pop %v1390
        %v1408 = vpack.c.bf16 %v1393, %v1392
        %v1409 = vpack.c.bf16 %v1395, %v1394
        %v1410 = vpack.c.bf16 %v1397, %v1396
        %v1411 = vpack.c.bf16 %v1399, %v1398
        %v1412 = vpack.c.bf16 %v1401, %v1400
        %v1413 = vpack.c.bf16 %v1403, %v1402
        %v1414 = vpack.c.bf16 %v1405, %v1404
        %v1415 = vpack.c.bf16 %v1407, %v1406
        %v1416 = vld [vmem:[%s3] sm:$0xf]
        %v1417 = vld [vmem:[%s3 + $0x4] sm:$0xf]
        %v1418 = vld [vmem:[%s3 + $0x8] sm:$0xf]
        %v1419 = vld [vmem:[%s3 + $0xc] sm:$0xf]
        %v1420 = vld [vmem:[%s3 + $0x10] sm:$0xf]
        %v1421 = vld [vmem:[%s3 + $0x14] sm:$0xf]
        %v1422 = vld [vmem:[%s3 + $0x18] sm:$0xf]
        %v1423 = vld [vmem:[%s3 + $0x1c] sm:$0xf]
        %v1424 = vld [vmem:[%s3 + $0x20] sm:$0xf]
        %v1425 = vld [vmem:[%s3 + $0x24] sm:$0xf]
        %v1426 = vld [vmem:[%s3 + $0x28] sm:$0xf]
        %v1427 = vld [vmem:[%s3 + $0x2c] sm:$0xf]
        %v1428 = vld [vmem:[%s3 + $0x30] sm:$0xf]
        %v1429 = vld [vmem:[%s3 + $0x34] sm:$0xf]
        %v1430 = vld [vmem:[%s3 + $0x38] sm:$0xf]
        %v1431 = vld [vmem:[%s3 + $0x3c] sm:$0xf]
        %v1432 = vld [vmem:[%s4] sm:$0x1]
        %v1434 = vperm.slane %v1432, 0
        %v1452 = vunpack.c.l.b16 %v1416
        %v1453 = vunpack.c.l.b16 %v1417
        %v1454 = vunpack.c.l.b16 %v1418
        %v1455 = vunpack.c.l.b16 %v1419
        %v1456 = vunpack.c.l.b16 %v1420
        %v1457 = vunpack.c.l.b16 %v1421
        %v1458 = vunpack.c.l.b16 %v1422
        %v1459 = vunpack.c.l.b16 %v1423
        %v1460 = vunpack.c.l.b16 %v1424
        %v1461 = vunpack.c.l.b16 %v1425
        %v1462 = vunpack.c.l.b16 %v1426
        %v1463 = vunpack.c.l.b16 %v1427
        %v1464 = vunpack.c.l.b16 %v1428
        %v1465 = vunpack.c.l.b16 %v1429
        %v1466 = vunpack.c.l.b16 %v1430
        %v1467 = vunpack.c.l.b16 %v1431
        %v1468 = vpack.c.b16 %v1453, %v1452
        %v1469 = vpack.c.b16 %v1455, %v1454
        %v1470 = vpack.c.b16 %v1457, %v1456
        %v1471 = vpack.c.b16 %v1459, %v1458
        %v1472 = vpack.c.b16 %v1461, %v1460
        %v1473 = vpack.c.b16 %v1463, %v1462
        %v1474 = vpack.c.b16 %v1465, %v1464
        %v1475 = vpack.c.b16 %v1467, %v1466
        %1484 = vmatpush.bf16.msra.mxu0 %v1475
        %1485 = vmatpush.bf16.msra.mxu0 %v1474
        %1486 = vmatpush.bf16.msra.mxu0 %v1473
        %1487 = vmatpush.bf16.msra.mxu0 %v1472
        %1488 = vmatpush.bf16.msra.mxu0 %v1471
        %1489 = vmatpush.bf16.msra.mxu0 %v1470
        %1490 = vmatpush.bf16.msra.mxu0 %v1469
        %1491 = vmatpush.bf16.msra.mxu0 %v1468
        %1492 = vmatmul.bf16.gmra.mxu0 %v1408
        %v1493 = vpop.f32.mrf.mxu0
        %v1494 = vadd.f32 %v1434, %v1493
        %v1495 = vpop.f32.mrf.mxu0
        %v1496 = vadd.f32 %v1434, %v1495
        %1497 = vmatmul.bf16.gmra.mxu0 %v1409
        %v1498 = vpop.f32.mrf.mxu0
        %v1499 = vadd.f32 %v1434, %v1498
        %v1500 = vpop.f32.mrf.mxu0
        %v1501 = vadd.f32 %v1434, %v1500
        %1502 = vmatmul.bf16.gmra.mxu0 %v1410
        %v1503 = vpop.f32.mrf.mxu0
        %v1504 = vadd.f32 %v1434, %v1503
        %v1505 = vpop.f32.mrf.mxu0
        %v1506 = vadd.f32 %v1434, %v1505
        %1507 = vmatmul.bf16.gmra.mxu0 %v1411
        %v1508 = vpop.f32.mrf.mxu0
        %v1509 = vadd.f32 %v1434, %v1508
        %v1510 = vpop.f32.mrf.mxu0
        %v1511 = vadd.f32 %v1434, %v1510
        %1512 = vmatmul.bf16.gmra.mxu0 %v1412
        %v1513 = vpop.f32.mrf.mxu0
        %v1514 = vadd.f32 %v1434, %v1513
        %v1515 = vpop.f32.mrf.mxu0
        %v1516 = vadd.f32 %v1434, %v1515
        %1517 = vmatmul.bf16.gmra.mxu0 %v1413
        %v1518 = vpop.f32.mrf.mxu0
        %v1519 = vadd.f32 %v1434, %v1518
        %v1520 = vpop.f32.mrf.mxu0
        %v1521 = vadd.f32 %v1434, %v1520
        %1522 = vmatmul.bf16.gmra.mxu0 %v1414
        %v1523 = vpop.f32.mrf.mxu0
        %v1524 = vadd.f32 %v1434, %v1523
        %v1525 = vpop.f32.mrf.mxu0
        %v1526 = vadd.f32 %v1434, %v1525
        %1527 = vmatmul.bf16.gmra.mxu0 %v1415
        %v1528 = vpop.f32.mrf.mxu0
        %v1529 = vadd.f32 %v1434, %v1528
        %v1530 = vpop.f32.mrf.mxu0
        %v1531 = vadd.f32 %v1434, %v1530
        %1532 = vdwg.mxu0
        %v1533 = vtanh.pop %v1494
        %v1534 = vtanh.pop %v1496
        %v1535 = vtanh.pop %v1499
        %v1536 = vtanh.pop %v1501
        %v1537 = vtanh.pop %v1504
        %v1538 = vtanh.pop %v1506
        %v1539 = vtanh.pop %v1509
        %v1540 = vtanh.pop %v1511
        %v1541 = vtanh.pop %v1514
        %v1542 = vtanh.pop %v1516
        %v1543 = vtanh.pop %v1519
        %v1544 = vtanh.pop %v1521
        %v1545 = vtanh.pop %v1524
        %v1546 = vtanh.pop %v1526
        %v1547 = vtanh.pop %v1529
        %v1548 = vtanh.pop %v1531
        %v1549 = vpack.c.bf16 %v1534, %v1533
        %v1550 = vpack.c.bf16 %v1536, %v1535
        %v1551 = vpack.c.bf16 %v1538, %v1537
        %v1552 = vpack.c.bf16 %v1540, %v1539
        %v1553 = vpack.c.bf16 %v1542, %v1541
        %v1554 = vpack.c.bf16 %v1544, %v1543
        %v1555 = vpack.c.bf16 %v1546, %v1545
        %v1556 = vpack.c.bf16 %v1548, %v1547
        %v1557 = vld [vmem:[%s5] sm:$0xf]
        %v1558 = vld [vmem:[%s5 + $0x4] sm:$0xf]
        %v1559 = vld [vmem:[%s5 + $0x8] sm:$0xf]
        %v1560 = vld [vmem:[%s5 + $0xc] sm:$0xf]
        %v1561 = vld [vmem:[%s5 + $0x10] sm:$0xf]
        %v1562 = vld [vmem:[%s5 + $0x14] sm:$0xf]
        %v1563 = vld [vmem:[%s5 + $0x18] sm:$0xf]
        %v1564 = vld [vmem:[%s5 + $0x1c] sm:$0xf]
        %v1565 = vld [vmem:[%s5 + $0x20] sm:$0xf]
        %v1566 = vld [vmem:[%s5 + $0x24] sm:$0xf]
        %v1567 = vld [vmem:[%s5 + $0x28] sm:$0xf]
        %v1568 = vld [vmem:[%s5 + $0x2c] sm:$0xf]
        %v1569 = vld [vmem:[%s5 + $0x30] sm:$0xf]
        %v1570 = vld [vmem:[%s5 + $0x34] sm:$0xf]
        %v1571 = vld [vmem:[%s5 + $0x38] sm:$0xf]
        %v1572 = vld [vmem:[%s5 + $0x3c] sm:$0xf]
        %v1573 = vld [vmem:[%s6] sm:$0x1]
        %v1575 = vperm.slane %v1573, 0
        %v1593 = vunpack.c.l.b16 %v1557
        %v1594 = vunpack.c.l.b16 %v1558
        %v1595 = vunpack.c.l.b16 %v1559
        %v1596 = vunpack.c.l.b16 %v1560
        %v1597 = vunpack.c.l.b16 %v1561
        %v1598 = vunpack.c.l.b16 %v1562
        %v1599 = vunpack.c.l.b16 %v1563
        %v1600 = vunpack.c.l.b16 %v1564
        %v1601 = vunpack.c.l.b16 %v1565
        %v1602 = vunpack.c.l.b16 %v1566
        %v1603 = vunpack.c.l.b16 %v1567
        %v1604 = vunpack.c.l.b16 %v1568
        %v1605 = vunpack.c.l.b16 %v1569
        %v1606 = vunpack.c.l.b16 %v1570
        %v1607 = vunpack.c.l.b16 %v1571
        %v1608 = vunpack.c.l.b16 %v1572
        %v1609 = vpack.c.b16 %v1594, %v1593
        %v1610 = vpack.c.b16 %v1596, %v1595
        %v1611 = vpack.c.b16 %v1598, %v1597
        %v1612 = vpack.c.b16 %v1600, %v1599
        %v1613 = vpack.c.b16 %v1602, %v1601
        %v1614 = vpack.c.b16 %v1604, %v1603
        %v1615 = vpack.c.b16 %v1606, %v1605
        %v1616 = vpack.c.b16 %v1608, %v1607
        %1625 = vmatpush.bf16.msra.mxu0 %v1616
        %1626 = vmatpush.bf16.msra.mxu0 %v1615
        %1627 = vmatpush.bf16.msra.mxu0 %v1614
        %1628 = vmatpush.bf16.msra.mxu0 %v1613
        %1629 = vmatpush.bf16.msra.mxu0 %v1612
        %1630 = vmatpush.bf16.msra.mxu0 %v1611
        %1631 = vmatpush.bf16.msra.mxu0 %v1610
        %1632 = vmatpush.bf16.msra.mxu0 %v1609
        %1633 = vmatmul.bf16.gmra.mxu0 %v1549
        %v1634 = vpop.f32.mrf.mxu0
        %v1635 = vadd.f32 %v1575, %v1634
        %v1636 = vpop.f32.mrf.mxu0
        %v1637 = vadd.f32 %v1575, %v1636
        %1638 = vmatmul.bf16.gmra.mxu0 %v1550
        %v1639 = vpop.f32.mrf.mxu0
        %v1640 = vadd.f32 %v1575, %v1639
        %v1641 = vpop.f32.mrf.mxu0
        %v1642 = vadd.f32 %v1575, %v1641
        %1643 = vmatmul.bf16.gmra.mxu0 %v1551
        %v1644 = vpop.f32.mrf.mxu0
        %v1645 = vadd.f32 %v1575, %v1644
        %v1646 = vpop.f32.mrf.mxu0
        %v1647 = vadd.f32 %v1575, %v1646
        %1648 = vmatmul.bf16.gmra.mxu0 %v1552
        %v1649 = vpop.f32.mrf.mxu0
        %v1650 = vadd.f32 %v1575, %v1649
        %v1651 = vpop.f32.mrf.mxu0
        %v1652 = vadd.f32 %v1575, %v1651
        %1653 = vmatmul.bf16.gmra.mxu0 %v1553
        %v1654 = vpop.f32.mrf.mxu0
        %v1655 = vadd.f32 %v1575, %v1654
        %v1656 = vpop.f32.mrf.mxu0
        %v1657 = vadd.f32 %v1575, %v1656
        %1658 = vmatmul.bf16.gmra.mxu0 %v1554
        %v1659 = vpop.f32.mrf.mxu0
        %v1660 = vadd.f32 %v1575, %v1659
        %v1661 = vpop.f32.mrf.mxu0
        %v1662 = vadd.f32 %v1575, %v1661
        %1663 = vmatmul.bf16.gmra.mxu0 %v1555
        %v1664 = vpop.f32.mrf.mxu0
        %v1665 = vadd.f32 %v1575, %v1664
        %v1666 = vpop.f32.mrf.mxu0
        %v1667 = vadd.f32 %v1575, %v1666
        %1668 = vmatmul.bf16.gmra.mxu0 %v1556
        %v1669 = vpop.f32.mrf.mxu0
        %v1670 = vadd.f32 %v1575, %v1669
        %v1671 = vpop.f32.mrf.mxu0
        %v1672 = vadd.f32 %v1575, %v1671
        %1673 = vdwg.mxu0
        %v1674 = vtanh.pop %v1635
        %v1675 = vtanh.pop %v1637
        %v1676 = vtanh.pop %v1640
        %v1677 = vtanh.pop %v1642
        %v1678 = vtanh.pop %v1645
        %v1679 = vtanh.pop %v1647
        %v1680 = vtanh.pop %v1650
        %v1681 = vtanh.pop %v1652
        %v1682 = vtanh.pop %v1655
        %v1683 = vtanh.pop %v1657
        %v1684 = vtanh.pop %v1660
        %v1685 = vtanh.pop %v1662
        %v1686 = vtanh.pop %v1665
        %v1687 = vtanh.pop %v1667
        %v1688 = vtanh.pop %v1670
        %v1689 = vtanh.pop %v1672
        %v1690 = vpack.c.bf16 %v1675, %v1674
        %v1691 = vpack.c.bf16 %v1677, %v1676
        %v1692 = vpack.c.bf16 %v1679, %v1678
        %v1693 = vpack.c.bf16 %v1681, %v1680
        %v1694 = vpack.c.bf16 %v1683, %v1682
        %v1695 = vpack.c.bf16 %v1685, %v1684
        %v1696 = vpack.c.bf16 %v1687, %v1686
        %v1697 = vpack.c.bf16 %v1689, %v1688
        %1698 = vmatpush.bf16.msra.mxu0 %v1616
        %1699 = vmatpush.bf16.msra.mxu0 %v1615
        %1700 = vmatpush.bf16.msra.mxu0 %v1614
        %1701 = vmatpush.bf16.msra.mxu0 %v1613
        %1702 = vmatpush.bf16.msra.mxu0 %v1612
        %1703 = vmatpush.bf16.msra.mxu0 %v1611
        %1704 = vmatpush.bf16.msra.mxu0 %v1610
        %1705 = vmatpush.bf16.msra.mxu0 %v1609
        %1706 = vmatmul.bf16.gmra.mxu0 %v1690
        %v1707 = vpop.f32.mrf.mxu0
        %v1708 = vadd.f32 %v1575, %v1707
        %v1709 = vpop.f32.mrf.mxu0
        %v1710 = vadd.f32 %v1575, %v1709
        %1711 = vmatmul.bf16.gmra.mxu0 %v1691
        %v1712 = vpop.f32.mrf.mxu0
        %v1713 = vadd.f32 %v1575, %v1712
        %v1714 = vpop.f32.mrf.mxu0
        %v1715 = vadd.f32 %v1575, %v1714
        %1716 = vmatmul.bf16.gmra.mxu0 %v1692
        %v1717 = vpop.f32.mrf.mxu0
        %v1718 = vadd.f32 %v1575, %v1717
        %v1719 = vpop.f32.mrf.mxu0
        %v1720 = vadd.f32 %v1575, %v1719
        %1721 = vmatmul.bf16.gmra.mxu0 %v1693
        %v1722 = vpop.f32.mrf.mxu0
        %v1723 = vadd.f32 %v1575, %v1722
        %v1724 = vpop.f32.mrf.mxu0
        %v1725 = vadd.f32 %v1575, %v1724
        %1726 = vmatmul.bf16.gmra.mxu0 %v1694
        %v1727 = vpop.f32.mrf.mxu0
        %v1728 = vadd.f32 %v1575, %v1727
        %v1729 = vpop.f32.mrf.mxu0
        %v1730 = vadd.f32 %v1575, %v1729
        %1731 = vmatmul.bf16.gmra.mxu0 %v1695
        %v1732 = vpop.f32.mrf.mxu0
        %v1733 = vadd.f32 %v1575, %v1732
        %v1734 = vpop.f32.mrf.mxu0
        %v1735 = vadd.f32 %v1575, %v1734
        %1736 = vmatmul.bf16.gmra.mxu0 %v1696
        %v1737 = vpop.f32.mrf.mxu0
        %v1738 = vadd.f32 %v1575, %v1737
        %v1739 = vpop.f32.mrf.mxu0
        %v1740 = vadd.f32 %v1575, %v1739
        %1741 = vmatmul.bf16.gmra.mxu0 %v1697
        %v1742 = vpop.f32.mrf.mxu0
        %v1743 = vadd.f32 %v1575, %v1742
        %v1744 = vpop.f32.mrf.mxu0
        %v1745 = vadd.f32 %v1575, %v1744
        %1746 = vdwg.mxu0
        %v1747 = vlaneseq
        %v1748 = vand.u32 %v1747, 127
        %vm1749 = vcmp.lt.s32.totalorder %v1748, 100
        %v1750 = vsel %vm1749, %v1708, -1e+30
        %v1751 = vsel %vm1749, %v1710, -1e+30
        %v1752 = vsel %vm1749, %v1713, -1e+30
        %v1753 = vsel %vm1749, %v1715, -1e+30
        %v1754 = vsel %vm1749, %v1718, -1e+30
        %v1755 = vsel %vm1749, %v1720, -1e+30
        %v1756 = vsel %vm1749, %v1723, -1e+30
        %v1757 = vsel %vm1749, %v1725, -1e+30
        %v1758 = vsel %vm1749, %v1728, -1e+30
        %v1759 = vsel %vm1749, %v1730, -1e+30
        %v1760 = vsel %vm1749, %v1733, -1e+30
        %v1761 = vsel %vm1749, %v1735, -1e+30
        %v1762 = vsel %vm1749, %v1738, -1e+30
        %v1763 = vsel %vm1749, %v1740, -1e+30
        %v1764 = vsel %vm1749, %v1743, -1e+30
        %v1765 = vsel %vm1749, %v1745, -1e+30
        %1766 = vmax.xlane.f32.xlu0 %v1750
        %v1767 = vpop.xlane.xlu0 %1766
        %1768 = vmax.xlane.f32.xlu0 %v1751
        %v1769 = vpop.xlane.xlu0 %1768
        %1770 = vmax.xlane.f32.xlu0 %v1752
        %v1771 = vpop.xlane.xlu0 %1770
        %1772 = vmax.xlane.f32.xlu0 %v1753
        %v1773 = vpop.xlane.xlu0 %1772
        %1774 = vmax.xlane.f32.xlu0 %v1754
        %v1775 = vpop.xlane.xlu0 %1774
        %1776 = vmax.xlane.f32.xlu0 %v1755
        %v1777 = vpop.xlane.xlu0 %1776
        %1778 = vmax.xlane.f32.xlu0 %v1756
        %v1779 = vpop.xlane.xlu0 %1778
        %1780 = vmax.xlane.f32.xlu0 %v1757
        %v1781 = vpop.xlane.xlu0 %1780
        %1782 = vmax.xlane.f32.xlu0 %v1758
        %v1783 = vpop.xlane.xlu0 %1782
        %1784 = vmax.xlane.f32.xlu0 %v1759
        %v1785 = vpop.xlane.xlu0 %1784
        %1786 = vmax.xlane.f32.xlu0 %v1760
        %v1787 = vpop.xlane.xlu0 %1786
        %1788 = vmax.xlane.f32.xlu0 %v1761
        %v1789 = vpop.xlane.xlu0 %1788
        %1790 = vmax.xlane.f32.xlu0 %v1762
        %v1791 = vpop.xlane.xlu0 %1790
        %1792 = vmax.xlane.f32.xlu0 %v1763
        %v1793 = vpop.xlane.xlu0 %1792
        %1794 = vmax.xlane.f32.xlu0 %v1764
        %v1795 = vpop.xlane.xlu0 %1794
        %1796 = vmax.xlane.f32.xlu0 %v1765
        %v1797 = vpop.xlane.xlu0 %1796
        %v1798 = vsub.f32 %v1750, %v1767
        %v1799 = vsub.f32 %v1751, %v1769
        %v1800 = vsub.f32 %v1752, %v1771
        %v1801 = vsub.f32 %v1753, %v1773
        %v1802 = vsub.f32 %v1754, %v1775
        %v1803 = vsub.f32 %v1755, %v1777
        %v1804 = vsub.f32 %v1756, %v1779
        %v1805 = vsub.f32 %v1757, %v1781
        %v1806 = vsub.f32 %v1758, %v1783
        %v1807 = vsub.f32 %v1759, %v1785
        %v1808 = vsub.f32 %v1760, %v1787
        %v1809 = vsub.f32 %v1761, %v1789
        %v1810 = vsub.f32 %v1762, %v1791
        %v1811 = vsub.f32 %v1763, %v1793
        %v1812 = vsub.f32 %v1764, %v1795
        %v1813 = vsub.f32 %v1765, %v1797
        %v1814 = vmul.f32 %v1798, 1.442695
        %v1815 = vpow.pop %v1814
        %v1816 = vmul.f32 %v1799, 1.442695
        %v1817 = vpow.pop %v1816
        %v1818 = vmul.f32 %v1800, 1.442695
        %v1819 = vpow.pop %v1818
        %v1820 = vmul.f32 %v1801, 1.442695
        %v1821 = vpow.pop %v1820
        %v1822 = vmul.f32 %v1802, 1.442695
        %v1823 = vpow.pop %v1822
        %v1824 = vmul.f32 %v1803, 1.442695
        %v1825 = vpow.pop %v1824
        %v1826 = vmul.f32 %v1804, 1.442695
        %v1827 = vpow.pop %v1826
        %v1828 = vmul.f32 %v1805, 1.442695
        %v1829 = vpow.pop %v1828
        %v1830 = vmul.f32 %v1806, 1.442695
        %v1831 = vpow.pop %v1830
        %v1832 = vmul.f32 %v1807, 1.442695
        %v1833 = vpow.pop %v1832
        %v1834 = vmul.f32 %v1808, 1.442695
        %v1835 = vpow.pop %v1834
        %v1836 = vmul.f32 %v1809, 1.442695
        %v1837 = vpow.pop %v1836
        %v1838 = vmul.f32 %v1810, 1.442695
        %v1839 = vpow.pop %v1838
        %v1840 = vmul.f32 %v1811, 1.442695
        %v1841 = vpow.pop %v1840
        %v1842 = vmul.f32 %v1812, 1.442695
        %v1843 = vpow.pop %v1842
        %v1844 = vmul.f32 %v1813, 1.442695
        %v1845 = vpow.pop %v1844
        %1846 = vadd.xlane.f32.xlu0 %v1815
        %v1847 = vpop.xlane.xlu0 %1846
        %1848 = vadd.xlane.f32.xlu0 %v1817
        %v1849 = vpop.xlane.xlu0 %1848
        %1850 = vadd.xlane.f32.xlu0 %v1819
        %v1851 = vpop.xlane.xlu0 %1850
        %1852 = vadd.xlane.f32.xlu0 %v1821
        %v1853 = vpop.xlane.xlu0 %1852
        %1854 = vadd.xlane.f32.xlu0 %v1823
        %v1855 = vpop.xlane.xlu0 %1854
        %1856 = vadd.xlane.f32.xlu0 %v1825
        %v1857 = vpop.xlane.xlu0 %1856
        %1858 = vadd.xlane.f32.xlu0 %v1827
        %v1859 = vpop.xlane.xlu0 %1858
        %1860 = vadd.xlane.f32.xlu0 %v1829
        %v1861 = vpop.xlane.xlu0 %1860
        %1862 = vadd.xlane.f32.xlu0 %v1831
        %v1863 = vpop.xlane.xlu0 %1862
        %1864 = vadd.xlane.f32.xlu0 %v1833
        %v1865 = vpop.xlane.xlu0 %1864
        %1866 = vadd.xlane.f32.xlu0 %v1835
        %v1867 = vpop.xlane.xlu0 %1866
        %1868 = vadd.xlane.f32.xlu0 %v1837
        %v1869 = vpop.xlane.xlu0 %1868
        %1870 = vadd.xlane.f32.xlu0 %v1839
        %v1871 = vpop.xlane.xlu0 %1870
        %1872 = vadd.xlane.f32.xlu0 %v1841
        %v1873 = vpop.xlane.xlu0 %1872
        %1874 = vadd.xlane.f32.xlu0 %v1843
        %v1875 = vpop.xlane.xlu0 %1874
        %1876 = vadd.xlane.f32.xlu0 %v1845
        %v1877 = vpop.xlane.xlu0 %1876
        %v1878 = vlog2.pop %v1847
        %v1879 = vmul.f32 %v1878, 0.6931472
        %v1880 = vlog2.pop %v1849
        %v1881 = vmul.f32 %v1880, 0.6931472
        %v1882 = vlog2.pop %v1851
        %v1883 = vmul.f32 %v1882, 0.6931472
        %v1884 = vlog2.pop %v1853
        %v1885 = vmul.f32 %v1884, 0.6931472
        %v1886 = vlog2.pop %v1855
        %v1887 = vmul.f32 %v1886, 0.6931472
        %v1888 = vlog2.pop %v1857
        %v1889 = vmul.f32 %v1888, 0.6931472
        %v1890 = vlog2.pop %v1859
        %v1891 = vmul.f32 %v1890, 0.6931472
        %v1892 = vlog2.pop %v1861
        %v1893 = vmul.f32 %v1892, 0.6931472
        %v1894 = vlog2.pop %v1863
        %v1895 = vmul.f32 %v1894, 0.6931472
        %v1896 = vlog2.pop %v1865
        %v1897 = vmul.f32 %v1896, 0.6931472
        %v1898 = vlog2.pop %v1867
        %v1899 = vmul.f32 %v1898, 0.6931472
        %v1900 = vlog2.pop %v1869
        %v1901 = vmul.f32 %v1900, 0.6931472
        %v1902 = vlog2.pop %v1871
        %v1903 = vmul.f32 %v1902, 0.6931472
        %v1904 = vlog2.pop %v1873
        %v1905 = vmul.f32 %v1904, 0.6931472
        %v1906 = vlog2.pop %v1875
        %v1907 = vmul.f32 %v1906, 0.6931472
        %v1908 = vlog2.pop %v1877
        %v1909 = vmul.f32 %v1908, 0.6931472
        %v1910 = vsub.f32 %v1798, %v1879
        %v1911 = vsub.f32 %v1799, %v1881
        %v1912 = vsub.f32 %v1800, %v1883
        %v1913 = vsub.f32 %v1801, %v1885
        %v1914 = vsub.f32 %v1802, %v1887
        %v1915 = vsub.f32 %v1803, %v1889
        %v1916 = vsub.f32 %v1804, %v1891
        %v1917 = vsub.f32 %v1805, %v1893
        %v1918 = vsub.f32 %v1806, %v1895
        %v1919 = vsub.f32 %v1807, %v1897
        %v1920 = vsub.f32 %v1808, %v1899
        %v1921 = vsub.f32 %v1809, %v1901
        %v1922 = vsub.f32 %v1810, %v1903
        %v1923 = vsub.f32 %v1811, %v1905
        %v1924 = vsub.f32 %v1812, %v1907
        %v1925 = vsub.f32 %v1813, %v1909
        %1926 = vst [vmem:[%s274] sm:$0xff] %v1910
        %1927 = vst [vmem:[%s274 + $0x8] sm:$0xff] %v1911
        %1928 = vst [vmem:[%s274 + $0x10] sm:$0xff] %v1912
        %1929 = vst [vmem:[%s274 + $0x18] sm:$0xff] %v1913
        %1930 = vst [vmem:[%s274 + $0x20] sm:$0xff] %v1914
        %1931 = vst [vmem:[%s274 + $0x28] sm:$0xff] %v1915
        %1932 = vst [vmem:[%s274 + $0x30] sm:$0xff] %v1916
        %1933 = vst [vmem:[%s274 + $0x38] sm:$0xff] %v1917
        %1934 = vst [vmem:[%s274 + $0x40] sm:$0xff] %v1918
        %1935 = vst [vmem:[%s274 + $0x48] sm:$0xff] %v1919
        %1936 = vst [vmem:[%s274 + $0x50] sm:$0xff] %v1920
        %1937 = vst [vmem:[%s274 + $0x58] sm:$0xff] %v1921
        %1938 = vst [vmem:[%s274 + $0x60] sm:$0xff] %v1922
        %1939 = vst [vmem:[%s274 + $0x68] sm:$0xff] %v1923
        %1940 = vst [vmem:[%s274 + $0x70] sm:$0xff] %v1924
        %1941 = vst [vmem:[%s274 + $0x78] sm:$0xff] %v1925
        %s1942 = sand.u32 %s181, 1
        %s1943 = scalar_lea.sflag [#allocation3], %s1942
        %s1944 = sand.u32 %s181, 1
        %s1945 = smul.addr %s1944, 128
        %s1946 = scalar_lea.vmem [#allocation2], %s1945
        // Predicated region
        $region49: #{tpu_custom_call.1} parent=47 // pred_check
          %p1947 = pneg %p191
        $region50: #{tpu_custom_call.1} parent=47 // pred_check_branch
          %1949 = sbr.rel (%p1947) target = $region52
        $region51: #{tpu_custom_call.1} parent=47 // pred_region
          %s1950 = smul.u32 16, %s21
          %1952 = vsyncadd %s1943, 0
          %s1953 = smul.addr %s1950, 8
          %s1954 = scalar_lea.hbm %s7, %s1953
          %s1955 = sshll.u32 %s1946, 4
          %s1956 = int_to_ptr.vmem [resolvable:$true] %s1955
          %s1957 = sshll.u32 %s1954, 4
          %s1958 = int_to_ptr.hbm [resolvable:$true] %s1957
          %1963 = dma.vmem_to_hbm [thread:$0]  %s1956, 2048, %s1958, %s1943, 128, 128, 8
        $region52: #{tpu_custom_call.1} parent=47 // pred_fallthru
          _
      $region48: #{tpu_custom_call.1} parent=5 // pred_fallthru
        _
      %p1964 = scmp.le.s32.totalorder 2, %s16
      // Predicated region
      $region53: #{tpu_custom_call.1} parent=5 // pred_check
        %p1965 = pneg %p1964
      $region54: #{tpu_custom_call.1} parent=5 // pred_check_branch
        %1967 = sbr.rel (%p1965) target = $region56
      $region55: #{tpu_custom_call.1} parent=5 // pred_region
        %s1968 = ssub.s32 %s16, 2
        // Predicated region
        $region57: #{tpu_custom_call.1} parent=55 // pred_check
          %p1969 = pneg %p197
        $region58: #{tpu_custom_call.1} parent=55 // pred_check_branch
          %1971 = sbr.rel (%p1969) target = $region60
        $region59: #{tpu_custom_call.1} parent=55 // pred_region
          %s1972 = sand.u32 %s182, 1
          %s1973 = scalar_lea.sflag [#allocation3], %s1972
          %s1974 = sand.u32 %s182, 1
          %s1975 = smul.addr %s1974, 128
          %s1976 = scalar_lea.vmem [#allocation2], %s1975
          %1978 = dma.done %s1973, 2048
        $region60: #{tpu_custom_call.1} parent=55 // pred_fallthru
          _
      $region56: #{tpu_custom_call.1} parent=5 // pred_fallthru
        _
    $region6: #{tpu_custom_call.1} parent=1 // loop_footer
      %s20 = sadd.s32 1, %s16
    $region7: #{tpu_custom_call.1} parent=1 // loop_footer_branch
      %15 = sbr.rel target = $region3
    $region8: #{tpu_custom_call.1} parent=1 // loop_exit
      _
    %1979 = vsyncpa [#allocation3], 1
    %s1980 = scalar_lea.sflag [#allocation3], 1
    %1981 = vsyncpa %s1980, 1

</llo_original>
